<compile_context>
chip_gen: v7x
topology: tpu7x:2x2x1
jax: 0.10.0
libtpu: 0.0.40
codegen_flags: <defaults>
</compile_context>

<pallas_src>
import functools

import jax
import jax.numpy as jnp
from jax.experimental import pallas as pl
from jax.experimental.pallas import tpu as pltpu

LANES = 128
TARGET_BLOCK_BYTES = 2 * 1024 * 1024   # per input per grid step (~2 MiB)
MIN_ROWS_FOR_KERNEL = 1024             # below this many (.,128) rows use plain jnp
W1, W2, W3 = 1.0 / 7.0, 2.0 / 7.0, 4.0 / 7.0


def _mse3_kernel(i1_ref, i2_ref, i3_ref, gt_ref, out_ref,
                 acc1_ref, acc2_ref, acc3_ref, *, tm, rows, has_partial):
    """Streaming weighted sum-of-squared-diffs into (8,128) f32 accumulators."""
    i = pl.program_id(0)
    nsteps = pl.num_programs(0)

    @pl.when(i == 0)
    def _():
        acc1_ref[...] = jnp.zeros_like(acc1_ref)
        acc2_ref[...] = jnp.zeros_like(acc2_ref)
        acc3_ref[...] = jnp.zeros_like(acc3_ref)

    def accumulate(mask):
        # astype is a no-op for f32 inputs; upcasts bf16/f16.
        g = gt_ref[...].astype(jnp.float32)
        # One stream at a time -> bounded live (tm,128) f32 temporaries.
        for x_ref, acc_ref in ((i1_ref, acc1_ref),
                               (i2_ref, acc2_ref),
                               (i3_ref, acc3_ref)):
            d = x_ref[...].astype(jnp.float32) - g
            sq = d * d
            if mask is not None:
                sq = jnp.where(mask, sq, 0.0)
            # (tm,128) -> (8,128): pure VPU vreg adds, no cross-lane work.
            acc_ref[...] += jnp.sum(sq.reshape(tm // 8, 8, LANES), axis=0)

    if has_partial:
        # Fast, mask-free path for every step except the (partial) last one.
        @pl.when(i < nsteps - 1)
        def _():
            accumulate(None)

        # Masked path only for the last step (boundary block may contain
        # unspecified data past `rows`).
        @pl.when(i == nsteps - 1)
        def _():
            valid = rows - i * tm
            row_ids = jax.lax.broadcasted_iota(jnp.int32, (tm, LANES), 0)
            accumulate(row_ids < valid)
    else:
        accumulate(None)

    @pl.when(i == nsteps - 1)
    def _():
        out_ref[...] = (jnp.float32(W1) * acc1_ref[...]
                        + jnp.float32(W2) * acc2_ref[...]
                        + jnp.float32(W3) * acc3_ref[...])


def _weighted_sq_sum_jnp(f1, f2, f3, fg):
    g = fg.astype(jnp.float32)
    s1 = jnp.sum(jnp.square(f1.astype(jnp.float32) - g))
    s2 = jnp.sum(jnp.square(f2.astype(jnp.float32) - g))
    s3 = jnp.sum(jnp.square(f3.astype(jnp.float32) - g))
    return jnp.float32(W1) * s1 + jnp.float32(W2) * s2 + jnp.float32(W3) * s3


def lossX3_mse(img1, img2, img3, gt):
    assert img1.shape == img2.shape == img3.shape == gt.shape
    n = int(img1.size)

    f1, f2, f3, fg = (jnp.reshape(x, (-1,)) for x in (img1, img2, img3, gt))

    itemsize = jnp.dtype(img1.dtype).itemsize
    # Row (sublane) alignment for the (rows, 128) view: 8 for 4-byte dtypes,
    # 16 for bf16/f16, 32 for 1-byte dtypes.
    row_align = max(8, 32 // max(itemsize, 1))

    rows = n // LANES
    rows_main = (rows // row_align) * row_align
    n_main = rows_main * LANES

    # Small-input fallback: kernel launch + grid setup would dominate.
    if rows_main < MIN_ROWS_FOR_KERNEL:
        return _weighted_sq_sum_jnp(f1, f2, f3, fg) / jnp.float32(n)

    # dtype-aware tile: keep bytes-per-step roughly constant (~2 MiB / input).
    rows_target = max(row_align, TARGET_BLOCK_BYTES // (LANES * itemsize))
    rows_target = (rows_target // row_align) * row_align
    tm = min(rows_target, rows_main)
    num_blocks = pl.cdiv(rows_main, tm)
    has_partial = (rows_main % tm) != 0   # static: mask code only compiled if needed

    def view(x):
        # Free reshape when n_main == n (common for image tensors); otherwise a
        # single prefix slice, with the tiny tail handled in jnp below.
        xm = x[:n_main] if n_main != n else x
        return xm.reshape(rows_main, LANES)

    m1, m2, m3, mg = (view(x) for x in (f1, f2, f3, fg))

    tile_spec = pl.BlockSpec((tm, LANES), lambda i: (i, 0))

    out = pl.pallas_call(
        functools.partial(_mse3_kernel, tm=tm, rows=rows_main,
                          has_partial=has_partial),
        out_shape=jax.ShapeDtypeStruct((8, LANES), jnp.float32),
        grid_spec=pltpu.PrefetchScalarGridSpec(
            num_scalar_prefetch=0,
            grid=(num_blocks,),
            in_specs=[tile_spec, tile_spec, tile_spec, tile_spec],
            out_specs=pl.BlockSpec((8, LANES), lambda i: (0, 0)),
            scratch_shapes=[pltpu.VMEM((8, LANES), jnp.float32)] * 3,
        ),
        compiler_params=pltpu.CompilerParams(
            dimension_semantics=("arbitrary",),
            vmem_limit_bytes=40 * 1024 * 1024),
    )(m1, m2, m3, mg)

    total = jnp.sum(out)

    if n_main < n:   # sub-row remainder (< row_align*128 + 128 elements)
        total = total + _weighted_sq_sum_jnp(f1[n_main:], f2[n_main:],
                                             f3[n_main:], fg[n_main:])

    return total / jnp.float32(n)


if __name__ == "__main__":
    key = jax.random.PRNGKey(0)

    def make_inputs(k, shape):
        k1, k2, k3, k4 = jax.random.split(k, 4)
        mk = lambda kk: jax.random.normal(kk, shape, dtype=jnp.float32)
        return mk(k1), mk(k2), mk(k3), mk(k4)

    def ref_loss(i1, i2, i3, g):
        def mse(a, b):
            return jnp.mean((a - b) ** 2)
        return (1.0 / 7.0) * mse(i1, g) + (2.0 / 7.0) * mse(i2, g) \
            + (4.0 / 7.0) * mse(i3, g)

    # Case 1: kernel path, single full block (1024 rows, mask-free).
    # Case 2: kernel path, partial last block + jnp tail (5172 rows, 2 blocks).
    # Case 3: small-input jnp fallback path.
    shapes = [(2, 4, 128, 128), (1, 3, 512, 431), (2, 4, 16, 16)]

    for idx, shape in enumerate(shapes):
        i1, i2, i3, g = make_inputs(jax.random.fold_in(key, idx), shape)
        loss = jax.block_until_ready(lossX3_mse(i1, i2, i3, g))
        expected = ref_loss(i1, i2, i3, g)
        assert jnp.allclose(loss, expected, rtol=1e-4, atol=1e-6), \
            (shape, loss, expected)

    print("KERNEL_OK")
</pallas_src>

<mosaic_0001>
module attributes {stable_mosaic.version = 11 : i64} {
  func.func @_mse3_kernel(%arg0: i32, %arg1: memref<1024x128xf32, #tpu.memory_space<vmem>>, %arg2: memref<1024x128xf32, #tpu.memory_space<vmem>>, %arg3: memref<1024x128xf32, #tpu.memory_space<vmem>>, %arg4: memref<1024x128xf32, #tpu.memory_space<vmem>>, %arg5: memref<8x128xf32, #tpu.memory_space<vmem>>, %arg6: memref<8x128xf32, #tpu.memory_space<vmem>>, %arg7: memref<8x128xf32, #tpu.memory_space<vmem>>, %arg8: memref<8x128xf32, #tpu.memory_space<vmem>>) attributes {dimension_semantics = [#tpu.dimension_semantics<arbitrary>], iteration_bounds = array<i64: 1>, scalar_prefetch = 0 : i64, scratch_operands = 3 : i64, tpu.core_type = #tpu.core_type<tc>, window_params = [{transform_indices = @transform_0, window_bounds = array<i64: 1024, 128>}, {transform_indices = @transform_1, window_bounds = array<i64: 1024, 128>}, {transform_indices = @transform_2, window_bounds = array<i64: 1024, 128>}, {transform_indices = @transform_3, window_bounds = array<i64: 1024, 128>}, {pipeline_mode = #tpu.pipeline_mode<synchronous>, transform_indices = @transform_4, window_bounds = array<i64: 8, 128>}]} {
    %c0_i32 = arith.constant 0 : i32
    %0 = arith.cmpi eq, %arg0, %c0_i32 : i32
    %1 = arith.extui %0 : i1 to i32
    %c0_i32_0 = arith.constant 0 : i32
    %2 = arith.cmpi ne, %1, %c0_i32_0 : i32
    scf.if %2 {
      %cst_24 = arith.constant 0.000000e+00 : f32
      %31 = vector.broadcast %cst_24 : f32 to vector<8x128xf32>
      %c0_25 = arith.constant 0 : index
      %c0_26 = arith.constant 0 : index
      %32 = vector.load %arg6[%c0_25, %c0_26] : memref<8x128xf32, #tpu.memory_space<vmem>>, vector<8x128xf32>
      tpu.vector_store %arg6[%c0_25, %c0_26], %31 {strides = array<i32>} : memref<8x128xf32, #tpu.memory_space<vmem>>, vector<8x128xf32>,
      %cst_27 = arith.constant 0.000000e+00 : f32
      %33 = vector.broadcast %cst_27 : f32 to vector<8x128xf32>
      %c0_28 = arith.constant 0 : index
      %c0_29 = arith.constant 0 : index
      %34 = vector.load %arg7[%c0_28, %c0_29] : memref<8x128xf32, #tpu.memory_space<vmem>>, vector<8x128xf32>
      tpu.vector_store %arg7[%c0_28, %c0_29], %33 {strides = array<i32>} : memref<8x128xf32, #tpu.memory_space<vmem>>, vector<8x128xf32>,
      %cst_30 = arith.constant 0.000000e+00 : f32
      %35 = vector.broadcast %cst_30 : f32 to vector<8x128xf32>
      %c0_31 = arith.constant 0 : index
      %c0_32 = arith.constant 0 : index
      %36 = vector.load %arg8[%c0_31, %c0_32] : memref<8x128xf32, #tpu.memory_space<vmem>>, vector<8x128xf32>
      tpu.vector_store %arg8[%c0_31, %c0_32], %35 {strides = array<i32>} : memref<8x128xf32, #tpu.memory_space<vmem>>, vector<8x128xf32>,
    } else {
    }
    %c0 = arith.constant 0 : index
    %c0_1 = arith.constant 0 : index
    %3 = vector.load %arg4[%c0, %c0_1] : memref<1024x128xf32, #tpu.memory_space<vmem>>, vector<1024x128xf32>
    %c0_2 = arith.constant 0 : index
    %c0_3 = arith.constant 0 : index
    %4 = vector.load %arg1[%c0_2, %c0_3] : memref<1024x128xf32, #tpu.memory_space<vmem>>, vector<1024x128xf32>
    %5 = arith.subf %4, %3 : vector<1024x128xf32>
    %6 = arith.mulf %5, %5 : vector<1024x128xf32>
    %c0_4 = arith.constant 0 : index
    %c0_5 = arith.constant 0 : index
    %7 = vector.load %arg6[%c0_4, %c0_5] : memref<8x128xf32, #tpu.memory_space<vmem>>, vector<8x128xf32>
    %8 = vector.shape_cast %6 : vector<1024x128xf32> to vector<128x8x128xf32>
    %cst = arith.constant dense<0.000000e+00> : vector<8x128xf32>
    %9 = vector.multi_reduction <add>, %8, %cst [0] : vector<128x8x128xf32> to vector<8x128xf32>
    %10 = arith.addf %7, %9 : vector<8x128xf32>
    %c0_6 = arith.constant 0 : index
    %c0_7 = arith.constant 0 : index
    %11 = vector.load %arg6[%c0_6, %c0_7] : memref<8x128xf32, #tpu.memory_space<vmem>>, vector<8x128xf32>
    tpu.vector_store %arg6[%c0_6, %c0_7], %10 {strides = array<i32>} : memref<8x128xf32, #tpu.memory_space<vmem>>, vector<8x128xf32>,
    %c0_8 = arith.constant 0 : index
    %c0_9 = arith.constant 0 : index
    %12 = vector.load %arg2[%c0_8, %c0_9] : memref<1024x128xf32, #tpu.memory_space<vmem>>, vector<1024x128xf32>
    %13 = arith.subf %12, %3 : vector<1024x128xf32>
    %14 = arith.mulf %13, %13 : vector<1024x128xf32>
    %c0_10 = arith.constant 0 : index
    %c0_11 = arith.constant 0 : index
    %15 = vector.load %arg7[%c0_10, %c0_11] : memref<8x128xf32, #tpu.memory_space<vmem>>, vector<8x128xf32>
    %16 = vector.shape_cast %14 : vector<1024x128xf32> to vector<128x8x128xf32>
    %cst_12 = arith.constant dense<0.000000e+00> : vector<8x128xf32>
    %17 = vector.multi_reduction <add>, %16, %cst_12 [0] : vector<128x8x128xf32> to vector<8x128xf32>
    %18 = arith.addf %15, %17 : vector<8x128xf32>
    %c0_13 = arith.constant 0 : index
    %c0_14 = arith.constant 0 : index
    %19 = vector.load %arg7[%c0_13, %c0_14] : memref<8x128xf32, #tpu.memory_space<vmem>>, vector<8x128xf32>
    tpu.vector_store %arg7[%c0_13, %c0_14], %18 {strides = array<i32>} : memref<8x128xf32, #tpu.memory_space<vmem>>, vector<8x128xf32>,
    %c0_15 = arith.constant 0 : index
    %c0_16 = arith.constant 0 : index
    %20 = vector.load %arg3[%c0_15, %c0_16] : memref<1024x128xf32, #tpu.memory_space<vmem>>, vector<1024x128xf32>
    %21 = arith.subf %20, %3 : vector<1024x128xf32>
    %22 = arith.mulf %21, %21 : vector<1024x128xf32>
    %c0_17 = arith.constant 0 : index
    %c0_18 = arith.constant 0 : index
    %23 = vector.load %arg8[%c0_17, %c0_18] : memref<8x128xf32, #tpu.memory_space<vmem>>, vector<8x128xf32>
    %24 = vector.shape_cast %22 : vector<1024x128xf32> to vector<128x8x128xf32>
    %cst_19 = arith.constant dense<0.000000e+00> : vector<8x128xf32>
    %25 = vector.multi_reduction <add>, %24, %cst_19 [0] : vector<128x8x128xf32> to vector<8x128xf32>
    %26 = arith.addf %23, %25 : vector<8x128xf32>
    %c0_20 = arith.constant 0 : index
    %c0_21 = arith.constant 0 : index
    %27 = vector.load %arg8[%c0_20, %c0_21] : memref<8x128xf32, #tpu.memory_space<vmem>>, vector<8x128xf32>
    tpu.vector_store %arg8[%c0_20, %c0_21], %26 {strides = array<i32>} : memref<8x128xf32, #tpu.memory_space<vmem>>, vector<8x128xf32>,
    %c0_i32_22 = arith.constant 0 : i32
    %28 = arith.cmpi eq, %arg0, %c0_i32_22 : i32
    %29 = arith.extui %28 : i1 to i32
    %c0_i32_23 = arith.constant 0 : i32
    %30 = arith.cmpi ne, %29, %c0_i32_23 : i32
    scf.if %30 {
      %c0_24 = arith.constant 0 : index
      %c0_25 = arith.constant 0 : index
      %31 = vector.load %arg6[%c0_24, %c0_25] : memref<8x128xf32, #tpu.memory_space<vmem>>, vector<8x128xf32>
      %cst_26 = arith.constant 0.142857149 : f32
      %32 = vector.broadcast %cst_26 : f32 to vector<8x128xf32>
      %33 = arith.mulf %32, %31 : vector<8x128xf32>
      %c0_27 = arith.constant 0 : index
      %c0_28 = arith.constant 0 : index
      %34 = vector.load %arg7[%c0_27, %c0_28] : memref<8x128xf32, #tpu.memory_space<vmem>>, vector<8x128xf32>
      %cst_29 = arith.constant 0.285714298 : f32
      %35 = vector.broadcast %cst_29 : f32 to vector<8x128xf32>
      %36 = arith.mulf %35, %34 : vector<8x128xf32>
      %37 = arith.addf %33, %36 : vector<8x128xf32>
      %c0_30 = arith.constant 0 : index
      %c0_31 = arith.constant 0 : index
      %38 = vector.load %arg8[%c0_30, %c0_31] : memref<8x128xf32, #tpu.memory_space<vmem>>, vector<8x128xf32>
      %cst_32 = arith.constant 0.571428597 : f32
      %39 = vector.broadcast %cst_32 : f32 to vector<8x128xf32>
      %40 = arith.mulf %39, %38 : vector<8x128xf32>
      %41 = arith.addf %37, %40 : vector<8x128xf32>
      %c0_33 = arith.constant 0 : index
      %c0_34 = arith.constant 0 : index
      %42 = vector.load %arg5[%c0_33, %c0_34] : memref<8x128xf32, #tpu.memory_space<vmem>>, vector<8x128xf32>
      tpu.vector_store %arg5[%c0_33, %c0_34], %41 {strides = array<i32>} : memref<8x128xf32, #tpu.memory_space<vmem>>, vector<8x128xf32>,
    } else {
    }
    return
  }
  func.func @transform_0(%arg0: i32) -> (i32, i32) {
    %c0_i32 = arith.constant 0 : i32
    %c0_i32_0 = arith.constant 0 : i32
    return %arg0, %c0_i32 : i32, i32
  }
  func.func @transform_1(%arg0: i32) -> (i32, i32) {
    %c0_i32 = arith.constant 0 : i32
    %c0_i32_0 = arith.constant 0 : i32
    return %arg0, %c0_i32 : i32, i32
  }
  func.func @transform_2(%arg0: i32) -> (i32, i32) {
    %c0_i32 = arith.constant 0 : i32
    %c0_i32_0 = arith.constant 0 : i32
    return %arg0, %c0_i32 : i32, i32
  }
  func.func @transform_3(%arg0: i32) -> (i32, i32) {
    %c0_i32 = arith.constant 0 : i32
    %c0_i32_0 = arith.constant 0 : i32
    return %arg0, %c0_i32 : i32, i32
  }
  func.func @transform_4(%arg0: i32) -> (i32, i32) {
    %c0_i32 = arith.constant 0 : i32
    %c0_i32_0 = arith.constant 0 : i32
    %c0_i32_1 = arith.constant 0 : i32
    return %c0_i32, %c0_i32_0 : i32, i32
  }
}

</mosaic_0001>

<llo_original>
// kernel: tpu_custom_call.1
$region0: #{tpu_custom_call.1}
  #allocation0 [shape = 'u32[]', space=smem, size = 0x4, offset = 0x4, fixed_abs, tag = 'smem constant byte address 0x4 - core index']
  #allocation1 [shape = 'u32[144,128]{1,0:T(1,128)}', space=vmem, size = 0x12000, scoped, tag = 'internal scratch']
  #allocation2 [shape = 'f32[8,128]{1,0:T(8,128)}', space=vmem, size = 0x1000, scoped, tag = 'scratch operand']
  #allocation3 [shape = 'f32[8,128]{1,0:T(8,128)}', space=vmem, size = 0x1000, scoped, tag = 'scratch operand']
  #allocation4 [shape = 'f32[8,128]{1,0:T(8,128)}', space=vmem, size = 0x1000, scoped, tag = 'scratch operand']
  %s0 = inlined_call_operand.hbm [shape: f32[1024,128], index: 0, kind: input, shape index: {}]
  %s1 = inlined_call_operand.hbm [shape: f32[1024,128], index: 1, kind: input, shape index: {}]
  %s2 = inlined_call_operand.hbm [shape: f32[1024,128], index: 2, kind: input, shape index: {}]
  %s3 = inlined_call_operand.hbm [shape: f32[1024,128], index: 3, kind: input, shape index: {}]
  %s4 = inlined_call_operand.hbm [shape: f32[8,128], index: 4, kind: output, shape index: {}]
  %s5 = sld [smem:[#allocation0]]
  $region50: #{tpu_custom_call.1} parent=0
    _
  %s7 = ssub.s32 1, %s5
  %s8 = scalar_select 0, %s7, %s5
  $region1: #{tpu_custom_call.1} parent=0
    #allocation5 [shape = 'u8[524288]{0}', space=vmem, size = 0x80000, scoped, tag = 'input window, operand 0, single buffered']
    #allocation6 [shape = 's32[1]{0}', space=sflag, size = 0x4, scoped, tag = 'scoped memory for tpu_custom_call.1']
    #allocation7 [shape = 's32[1]{0}', space=sflag, size = 0x4, scoped, tag = 'scoped memory for tpu_custom_call.1']
    #allocation8 [shape = 'u8[524288]{0}', space=vmem, size = 0x80000, scoped, tag = 'input window, operand 1, single buffered']
    #allocation9 [shape = 's32[1]{0}', space=sflag, size = 0x4, scoped, tag = 'scoped memory for tpu_custom_call.1']
    #allocation10 [shape = 'u8[524288]{0}', space=vmem, size = 0x80000, scoped, tag = 'input window, operand 2, single buffered']
    #allocation11 [shape = 'u8[524288]{0}', space=vmem, size = 0x80000, scoped, tag = 'input window, operand 3, single buffered']
    #allocation12 [shape = 's32[1]{0}', space=sflag, size = 0x4, scoped, tag = 'scoped memory for tpu_custom_call.1']
    #allocation13 [shape = 'u8[4096]{0}', space=vmem, size = 0x1000, scoped, tag = 'output window, operand 0, single buffered']
    %9 = vsyncpa [#allocation6], 0
    %10 = vsyncpa [#allocation9], 0
    %11 = vsyncpa [#allocation12], 0
    %12 = vsyncpa [#allocation7], 0
    // Predicated region
    $region2: #{tpu_custom_call.1} parent=1 // pred_check
      _
    $region3: #{tpu_custom_call.1} parent=1 // pred_check_branch
      %14 = sbr.rel (0) target = $region5
    $region4: #{tpu_custom_call.1} parent=1 // pred_region
      %s16 = ssub.s32 16384, 16384
      %17 = vsyncadd [#allocation6], %s16
      %s18 = sshll.u32 [#allocation5], 4
      %s19 = int_to_ptr.vmem [resolvable:$true] %s18
      %24 = dma.hbm_to_vmem [thread:$0]  %s0, 16384, %s19, [#allocation6], 128, 128, 8
    $region5: #{tpu_custom_call.1} parent=1 // pred_fallthru
      _
    // Predicated region
    $region6: #{tpu_custom_call.1} parent=1 // pred_check
      _
    $region7: #{tpu_custom_call.1} parent=1 // pred_check_branch
      %26 = sbr.rel (0) target = $region9
    $region8: #{tpu_custom_call.1} parent=1 // pred_region
      %s28 = ssub.s32 16384, 16384
      %29 = vsyncadd [#allocation9], %s28
      %s30 = sshll.u32 [#allocation8], 4
      %s31 = int_to_ptr.vmem [resolvable:$true] %s30
      %36 = dma.hbm_to_vmem [thread:$0]  %s1, 16384, %s31, [#allocation9], 128, 128, 8
    $region9: #{tpu_custom_call.1} parent=1 // pred_fallthru
      _
    // Predicated region
    $region10: #{tpu_custom_call.1} parent=1 // pred_check
      _
    $region11: #{tpu_custom_call.1} parent=1 // pred_check_branch
      %38 = sbr.rel (0) target = $region13
    $region12: #{tpu_custom_call.1} parent=1 // pred_region
      %s40 = ssub.s32 16384, 16384
      %41 = vsyncadd [#allocation9], %s40
      %s42 = sshll.u32 [#allocation10], 4
      %s43 = int_to_ptr.vmem [resolvable:$true] %s42
      %48 = dma.hbm_to_vmem [thread:$0]  %s2, 16384, %s43, [#allocation9], 128, 128, 8
    $region13: #{tpu_custom_call.1} parent=1 // pred_fallthru
      _
    // Predicated region
    $region14: #{tpu_custom_call.1} parent=1 // pred_check
      _
    $region15: #{tpu_custom_call.1} parent=1 // pred_check_branch
      %50 = sbr.rel (0) target = $region17
    $region16: #{tpu_custom_call.1} parent=1 // pred_region
      %s52 = ssub.s32 16384, 16384
      %53 = vsyncadd [#allocation12], %s52
      %s54 = sshll.u32 [#allocation11], 4
      %s55 = int_to_ptr.vmem [resolvable:$true] %s54
      %60 = dma.hbm_to_vmem [thread:$0]  %s3, 16384, %s55, [#allocation12], 128, 128, 8
    $region17: #{tpu_custom_call.1} parent=1 // pred_fallthru
      _
    // Predicated region
    $region18: #{tpu_custom_call.1} parent=1 // pred_check
      _
    $region19: #{tpu_custom_call.1} parent=1 // pred_check_branch
      %62 = sbr.rel (0) target = $region21
    $region20: #{tpu_custom_call.1} parent=1 // pred_region
      %63 = dma.done [#allocation6], 16384
    $region21: #{tpu_custom_call.1} parent=1 // pred_fallthru
      _
    // Predicated region
    $region22: #{tpu_custom_call.1} parent=1 // pred_check
      _
    $region23: #{tpu_custom_call.1} parent=1 // pred_check_branch
      %65 = sbr.rel (0) target = $region25
    $region24: #{tpu_custom_call.1} parent=1 // pred_region
      %66 = dma.done [#allocation9], 16384
    $region25: #{tpu_custom_call.1} parent=1 // pred_fallthru
      _
    // Predicated region
    $region26: #{tpu_custom_call.1} parent=1 // pred_check
      _
    $region27: #{tpu_custom_call.1} parent=1 // pred_check_branch
      %68 = sbr.rel (0) target = $region29
    $region28: #{tpu_custom_call.1} parent=1 // pred_region
      %69 = dma.done [#allocation9], 16384
    $region29: #{tpu_custom_call.1} parent=1 // pred_fallthru
      _
    // Predicated region
    $region30: #{tpu_custom_call.1} parent=1 // pred_check
      _
    $region31: #{tpu_custom_call.1} parent=1 // pred_check_branch
      %71 = sbr.rel (0) target = $region33
    $region32: #{tpu_custom_call.1} parent=1 // pred_region
      %72 = dma.done [#allocation12], 16384
    $region33: #{tpu_custom_call.1} parent=1 // pred_fallthru
      _
    %p73 = scmp.eq.s32.totalorder 0, 0
    // Predicated region
    $region34: #{tpu_custom_call.1} parent=1 // pred_check
      %p74 = pneg %p73
    $region35: #{tpu_custom_call.1} parent=1 // pred_check_branch
      %76 = sbr.rel (%p74) target = $region37
    $region36: #{tpu_custom_call.1} parent=1 // pred_region
      %77 = vst [vmem:[#allocation2] sm:$0xff] 0.0
      %78 = vst [vmem:[#allocation3] sm:$0xff] 0.0
      %79 = vst [vmem:[#allocation4] sm:$0xff] 0.0
    $region37: #{tpu_custom_call.1} parent=1 // pred_fallthru
      _
    %v80 = vld [vmem:[#allocation11] sm:$0xff]
    %v81 = vld [vmem:[#allocation11 + $0x8] sm:$0xff]
    %v82 = vld [vmem:[#allocation11 + $0x10] sm:$0xff]
    %v83 = vld [vmem:[#allocation11 + $0x18] sm:$0xff]
    %v84 = vld [vmem:[#allocation11 + $0x20] sm:$0xff]
    %v85 = vld [vmem:[#allocation11 + $0x28] sm:$0xff]
    %v86 = vld [vmem:[#allocation11 + $0x30] sm:$0xff]
    %v87 = vld [vmem:[#allocation11 + $0x38] sm:$0xff]
    %v88 = vld [vmem:[#allocation11 + $0x40] sm:$0xff]
    %v89 = vld [vmem:[#allocation11 + $0x48] sm:$0xff]
    %v90 = vld [vmem:[#allocation11 + $0x50] sm:$0xff]
    %v91 = vld [vmem:[#allocation11 + $0x58] sm:$0xff]
    %v92 = vld [vmem:[#allocation11 + $0x60] sm:$0xff]
    %v93 = vld [vmem:[#allocation11 + $0x68] sm:$0xff]
    %v94 = vld [vmem:[#allocation11 + $0x70] sm:$0xff]
    %v95 = vld [vmem:[#allocation11 + $0x78] sm:$0xff]
    %v96 = vld [vmem:[#allocation11 + $0x80] sm:$0xff]
    %v97 = vld [vmem:[#allocation11 + $0x88] sm:$0xff]
    %v98 = vld [vmem:[#allocation11 + $0x90] sm:$0xff]
    %v99 = vld [vmem:[#allocation11 + $0x98] sm:$0xff]
    %v100 = vld [vmem:[#allocation11 + $0xa0] sm:$0xff]
    %v101 = vld [vmem:[#allocation11 + $0xa8] sm:$0xff]
    %v102 = vld [vmem:[#allocation11 + $0xb0] sm:$0xff]
    %v103 = vld [vmem:[#allocation11 + $0xb8] sm:$0xff]
    %v104 = vld [vmem:[#allocation11 + $0xc0] sm:$0xff]
    %v105 = vld [vmem:[#allocation11 + $0xc8] sm:$0xff]
    %v106 = vld [vmem:[#allocation11 + $0xd0] sm:$0xff]
    %v107 = vld [vmem:[#allocation11 + $0xd8] sm:$0xff]
    %v108 = vld [vmem:[#allocation11 + $0xe0] sm:$0xff]
    %v109 = vld [vmem:[#allocation11 + $0xe8] sm:$0xff]
    %v110 = vld [vmem:[#allocation11 + $0xf0] sm:$0xff]
    %v111 = vld [vmem:[#allocation11 + $0xf8] sm:$0xff]
    %v112 = vld [vmem:[#allocation11 + $0x100] sm:$0xff]
    %v113 = vld [vmem:[#allocation11 + $0x108] sm:$0xff]
    %v114 = vld [vmem:[#allocation11 + $0x110] sm:$0xff]
    %v115 = vld [vmem:[#allocation11 + $0x118] sm:$0xff]
    %v116 = vld [vmem:[#allocation11 + $0x120] sm:$0xff]
    %v117 = vld [vmem:[#allocation11 + $0x128] sm:$0xff]
    %v118 = vld [vmem:[#allocation11 + $0x130] sm:$0xff]
    %v119 = vld [vmem:[#allocation11 + $0x138] sm:$0xff]
    %v120 = vld [vmem:[#allocation11 + $0x140] sm:$0xff]
    %v121 = vld [vmem:[#allocation11 + $0x148] sm:$0xff]
    %v122 = vld [vmem:[#allocation11 + $0x150] sm:$0xff]
    %v123 = vld [vmem:[#allocation11 + $0x158] sm:$0xff]
    %v124 = vld [vmem:[#allocation11 + $0x160] sm:$0xff]
    %v125 = vld [vmem:[#allocation11 + $0x168] sm:$0xff]
    %v126 = vld [vmem:[#allocation11 + $0x170] sm:$0xff]
    %v127 = vld [vmem:[#allocation11 + $0x178] sm:$0xff]
    %v128 = vld [vmem:[#allocation11 + $0x180] sm:$0xff]
    %v129 = vld [vmem:[#allocation11 + $0x188] sm:$0xff]
    %v130 = vld [vmem:[#allocation11 + $0x190] sm:$0xff]
    %v131 = vld [vmem:[#allocation11 + $0x198] sm:$0xff]
    %v132 = vld [vmem:[#allocation11 + $0x1a0] sm:$0xff]
    %v133 = vld [vmem:[#allocation11 + $0x1a8] sm:$0xff]
    %v134 = vld [vmem:[#allocation11 + $0x1b0] sm:$0xff]
    %v135 = vld [vmem:[#allocation11 + $0x1b8] sm:$0xff]
    %v136 = vld [vmem:[#allocation11 + $0x1c0] sm:$0xff]
    %v137 = vld [vmem:[#allocation11 + $0x1c8] sm:$0xff]
    %v138 = vld [vmem:[#allocation11 + $0x1d0] sm:$0xff]
    %v139 = vld [vmem:[#allocation11 + $0x1d8] sm:$0xff]
    %v140 = vld [vmem:[#allocation11 + $0x1e0] sm:$0xff]
    %v141 = vld [vmem:[#allocation11 + $0x1e8] sm:$0xff]
    %v142 = vld [vmem:[#allocation11 + $0x1f0] sm:$0xff]
    %v143 = vld [vmem:[#allocation11 + $0x1f8] sm:$0xff]
    %v144 = vld [vmem:[#allocation11 + $0x200] sm:$0xff]
    %v145 = vld [vmem:[#allocation11 + $0x208] sm:$0xff]
    %v146 = vld [vmem:[#allocation11 + $0x210] sm:$0xff]
    %v147 = vld [vmem:[#allocation11 + $0x218] sm:$0xff]
    %v148 = vld [vmem:[#allocation11 + $0x220] sm:$0xff]
    %v149 = vld [vmem:[#allocation11 + $0x228] sm:$0xff]
    %v150 = vld [vmem:[#allocation11 + $0x230] sm:$0xff]
    %v151 = vld [vmem:[#allocation11 + $0x238] sm:$0xff]
    %v152 = vld [vmem:[#allocation11 + $0x240] sm:$0xff]
    %v153 = vld [vmem:[#allocation11 + $0x248] sm:$0xff]
    %v154 = vld [vmem:[#allocation11 + $0x250] sm:$0xff]
    %v155 = vld [vmem:[#allocation11 + $0x258] sm:$0xff]
    %v156 = vld [vmem:[#allocation11 + $0x260] sm:$0xff]
    %v157 = vld [vmem:[#allocation11 + $0x268] sm:$0xff]
    %v158 = vld [vmem:[#allocation11 + $0x270] sm:$0xff]
    %v159 = vld [vmem:[#allocation11 + $0x278] sm:$0xff]
    %v160 = vld [vmem:[#allocation11 + $0x280] sm:$0xff]
    %v161 = vld [vmem:[#allocation11 + $0x288] sm:$0xff]
    %v162 = vld [vmem:[#allocation11 + $0x290] sm:$0xff]
    %v163 = vld [vmem:[#allocation11 + $0x298] sm:$0xff]
    %v164 = vld [vmem:[#allocation11 + $0x2a0] sm:$0xff]
    %v165 = vld [vmem:[#allocation11 + $0x2a8] sm:$0xff]
    %v166 = vld [vmem:[#allocation11 + $0x2b0] sm:$0xff]
    %v167 = vld [vmem:[#allocation11 + $0x2b8] sm:$0xff]
    %v168 = vld [vmem:[#allocation11 + $0x2c0] sm:$0xff]
    %v169 = vld [vmem:[#allocation11 + $0x2c8] sm:$0xff]
    %v170 = vld [vmem:[#allocation11 + $0x2d0] sm:$0xff]
    %v171 = vld [vmem:[#allocation11 + $0x2d8] sm:$0xff]
    %v172 = vld [vmem:[#allocation11 + $0x2e0] sm:$0xff]
    %v173 = vld [vmem:[#allocation11 + $0x2e8] sm:$0xff]
    %v174 = vld [vmem:[#allocation11 + $0x2f0] sm:$0xff]
    %v175 = vld [vmem:[#allocation11 + $0x2f8] sm:$0xff]
    %v176 = vld [vmem:[#allocation11 + $0x300] sm:$0xff]
    %v177 = vld [vmem:[#allocation11 + $0x308] sm:$0xff]
    %v178 = vld [vmem:[#allocation11 + $0x310] sm:$0xff]
    %v179 = vld [vmem:[#allocation11 + $0x318] sm:$0xff]
    %v180 = vld [vmem:[#allocation11 + $0x320] sm:$0xff]
    %v181 = vld [vmem:[#allocation11 + $0x328] sm:$0xff]
    %v182 = vld [vmem:[#allocation11 + $0x330] sm:$0xff]
    %v183 = vld [vmem:[#allocation11 + $0x338] sm:$0xff]
    %v184 = vld [vmem:[#allocation11 + $0x340] sm:$0xff]
    %v185 = vld [vmem:[#allocation11 + $0x348] sm:$0xff]
    %v186 = vld [vmem:[#allocation11 + $0x350] sm:$0xff]
    %v187 = vld [vmem:[#allocation11 + $0x358] sm:$0xff]
    %v188 = vld [vmem:[#allocation11 + $0x360] sm:$0xff]
    %v189 = vld [vmem:[#allocation11 + $0x368] sm:$0xff]
    %v190 = vld [vmem:[#allocation11 + $0x370] sm:$0xff]
    %v191 = vld [vmem:[#allocation11 + $0x378] sm:$0xff]
    %v192 = vld [vmem:[#allocation11 + $0x380] sm:$0xff]
    %v193 = vld [vmem:[#allocation11 + $0x388] sm:$0xff]
    %v194 = vld [vmem:[#allocation11 + $0x390] sm:$0xff]
    %v195 = vld [vmem:[#allocation11 + $0x398] sm:$0xff]
    %v196 = vld [vmem:[#allocation11 + $0x3a0] sm:$0xff]
    %v197 = vld [vmem:[#allocation11 + $0x3a8] sm:$0xff]
    %v198 = vld [vmem:[#allocation11 + $0x3b0] sm:$0xff]
    %v199 = vld [vmem:[#allocation11 + $0x3b8] sm:$0xff]
    %v200 = vld [vmem:[#allocation11 + $0x3c0] sm:$0xff]
    %v201 = vld [vmem:[#allocation11 + $0x3c8] sm:$0xff]
    %v202 = vld [vmem:[#allocation11 + $0x3d0] sm:$0xff]
    %v203 = vld [vmem:[#allocation11 + $0x3d8] sm:$0xff]
    %v204 = vld [vmem:[#allocation11 + $0x3e0] sm:$0xff]
    %v205 = vld [vmem:[#allocation11 + $0x3e8] sm:$0xff]
    %v206 = vld [vmem:[#allocation11 + $0x3f0] sm:$0xff]
    %v207 = vld [vmem:[#allocation11 + $0x3f8] sm:$0xff]
    %v208 = vld [vmem:[#allocation5] sm:$0xff]
    %v209 = vld [vmem:[#allocation5 + $0x8] sm:$0xff]
    %v210 = vld [vmem:[#allocation5 + $0x10] sm:$0xff]
    %v211 = vld [vmem:[#allocation5 + $0x18] sm:$0xff]
    %v212 = vld [vmem:[#allocation5 + $0x20] sm:$0xff]
    %v213 = vld [vmem:[#allocation5 + $0x28] sm:$0xff]
    %v214 = vld [vmem:[#allocation5 + $0x30] sm:$0xff]
    %v215 = vld [vmem:[#allocation5 + $0x38] sm:$0xff]
    %v216 = vld [vmem:[#allocation5 + $0x40] sm:$0xff]
    %v217 = vld [vmem:[#allocation5 + $0x48] sm:$0xff]
    %v218 = vld [vmem:[#allocation5 + $0x50] sm:$0xff]
    %v219 = vld [vmem:[#allocation5 + $0x58] sm:$0xff]
    %v220 = vld [vmem:[#allocation5 + $0x60] sm:$0xff]
    %v221 = vld [vmem:[#allocation5 + $0x68] sm:$0xff]
    %v222 = vld [vmem:[#allocation5 + $0x70] sm:$0xff]
    %v223 = vld [vmem:[#allocation5 + $0x78] sm:$0xff]
    %v224 = vld [vmem:[#allocation5 + $0x80] sm:$0xff]
    %v225 = vld [vmem:[#allocation5 + $0x88] sm:$0xff]
    %v226 = vld [vmem:[#allocation5 + $0x90] sm:$0xff]
    %v227 = vld [vmem:[#allocation5 + $0x98] sm:$0xff]
    %v228 = vld [vmem:[#allocation5 + $0xa0] sm:$0xff]
    %v229 = vld [vmem:[#allocation5 + $0xa8] sm:$0xff]
    %v230 = vld [vmem:[#allocation5 + $0xb0] sm:$0xff]
    %v231 = vld [vmem:[#allocation5 + $0xb8] sm:$0xff]
    %v232 = vld [vmem:[#allocation5 + $0xc0] sm:$0xff]
    %v233 = vld [vmem:[#allocation5 + $0xc8] sm:$0xff]
    %v234 = vld [vmem:[#allocation5 + $0xd0] sm:$0xff]
    %v235 = vld [vmem:[#allocation5 + $0xd8] sm:$0xff]
    %v236 = vld [vmem:[#allocation5 + $0xe0] sm:$0xff]
    %v237 = vld [vmem:[#allocation5 + $0xe8] sm:$0xff]
    %v238 = vld [vmem:[#allocation5 + $0xf0] sm:$0xff]
    %v239 = vld [vmem:[#allocation5 + $0xf8] sm:$0xff]
    %v240 = vld [vmem:[#allocation5 + $0x100] sm:$0xff]
    %v241 = vld [vmem:[#allocation5 + $0x108] sm:$0xff]
    %v242 = vld [vmem:[#allocation5 + $0x110] sm:$0xff]
    %v243 = vld [vmem:[#allocation5 + $0x118] sm:$0xff]
    %v244 = vld [vmem:[#allocation5 + $0x120] sm:$0xff]
    %v245 = vld [vmem:[#allocation5 + $0x128] sm:$0xff]
    %v246 = vld [vmem:[#allocation5 + $0x130] sm:$0xff]
    %v247 = vld [vmem:[#allocation5 + $0x138] sm:$0xff]
    %v248 = vld [vmem:[#allocation5 + $0x140] sm:$0xff]
    %v249 = vld [vmem:[#allocation5 + $0x148] sm:$0xff]
    %v250 = vld [vmem:[#allocation5 + $0x150] sm:$0xff]
    %v251 = vld [vmem:[#allocation5 + $0x158] sm:$0xff]
    %v252 = vld [vmem:[#allocation5 + $0x160] sm:$0xff]
    %v253 = vld [vmem:[#allocation5 + $0x168] sm:$0xff]
    %v254 = vld [vmem:[#allocation5 + $0x170] sm:$0xff]
    %v255 = vld [vmem:[#allocation5 + $0x178] sm:$0xff]
    %v256 = vld [vmem:[#allocation5 + $0x180] sm:$0xff]
    %v257 = vld [vmem:[#allocation5 + $0x188] sm:$0xff]
    %v258 = vld [vmem:[#allocation5 + $0x190] sm:$0xff]
    %v259 = vld [vmem:[#allocation5 + $0x198] sm:$0xff]
    %v260 = vld [vmem:[#allocation5 + $0x1a0] sm:$0xff]
    %v261 = vld [vmem:[#allocation5 + $0x1a8] sm:$0xff]
    %v262 = vld [vmem:[#allocation5 + $0x1b0] sm:$0xff]
    %v263 = vld [vmem:[#allocation5 + $0x1b8] sm:$0xff]
    %v264 = vld [vmem:[#allocation5 + $0x1c0] sm:$0xff]
    %v265 = vld [vmem:[#allocation5 + $0x1c8] sm:$0xff]
    %v266 = vld [vmem:[#allocation5 + $0x1d0] sm:$0xff]
    %v267 = vld [vmem:[#allocation5 + $0x1d8] sm:$0xff]
    %v268 = vld [vmem:[#allocation5 + $0x1e0] sm:$0xff]
    %v269 = vld [vmem:[#allocation5 + $0x1e8] sm:$0xff]
    %v270 = vld [vmem:[#allocation5 + $0x1f0] sm:$0xff]
    %v271 = vld [vmem:[#allocation5 + $0x1f8] sm:$0xff]
    %v272 = vld [vmem:[#allocation5 + $0x200] sm:$0xff]
    %v273 = vld [vmem:[#allocation5 + $0x208] sm:$0xff]
    %v274 = vld [vmem:[#allocation5 + $0x210] sm:$0xff]
    %v275 = vld [vmem:[#allocation5 + $0x218] sm:$0xff]
    %v276 = vld [vmem:[#allocation5 + $0x220] sm:$0xff]
    %v277 = vld [vmem:[#allocation5 + $0x228] sm:$0xff]
    %v278 = vld [vmem:[#allocation5 + $0x230] sm:$0xff]
    %v279 = vld [vmem:[#allocation5 + $0x238] sm:$0xff]
    %v280 = vld [vmem:[#allocation5 + $0x240] sm:$0xff]
    %v281 = vld [vmem:[#allocation5 + $0x248] sm:$0xff]
    %v282 = vld [vmem:[#allocation5 + $0x250] sm:$0xff]
    %v283 = vld [vmem:[#allocation5 + $0x258] sm:$0xff]
    %v284 = vld [vmem:[#allocation5 + $0x260] sm:$0xff]
    %v285 = vld [vmem:[#allocation5 + $0x268] sm:$0xff]
    %v286 = vld [vmem:[#allocation5 + $0x270] sm:$0xff]
    %v287 = vld [vmem:[#allocation5 + $0x278] sm:$0xff]
    %v288 = vld [vmem:[#allocation5 + $0x280] sm:$0xff]
    %v289 = vld [vmem:[#allocation5 + $0x288] sm:$0xff]
    %v290 = vld [vmem:[#allocation5 + $0x290] sm:$0xff]
    %v291 = vld [vmem:[#allocation5 + $0x298] sm:$0xff]
    %v292 = vld [vmem:[#allocation5 + $0x2a0] sm:$0xff]
    %v293 = vld [vmem:[#allocation5 + $0x2a8] sm:$0xff]
    %v294 = vld [vmem:[#allocation5 + $0x2b0] sm:$0xff]
    %v295 = vld [vmem:[#allocation5 + $0x2b8] sm:$0xff]
    %v296 = vld [vmem:[#allocation5 + $0x2c0] sm:$0xff]
    %v297 = vld [vmem:[#allocation5 + $0x2c8] sm:$0xff]
    %v298 = vld [vmem:[#allocation5 + $0x2d0] sm:$0xff]
    %v299 = vld [vmem:[#allocation5 + $0x2d8] sm:$0xff]
    %v300 = vld [vmem:[#allocation5 + $0x2e0] sm:$0xff]
    %v301 = vld [vmem:[#allocation5 + $0x2e8] sm:$0xff]
    %v302 = vld [vmem:[#allocation5 + $0x2f0] sm:$0xff]
    %v303 = vld [vmem:[#allocation5 + $0x2f8] sm:$0xff]
    %v304 = vld [vmem:[#allocation5 + $0x300] sm:$0xff]
    %v305 = vld [vmem:[#allocation5 + $0x308] sm:$0xff]
    %v306 = vld [vmem:[#allocation5 + $0x310] sm:$0xff]
    %v307 = vld [vmem:[#allocation5 + $0x318] sm:$0xff]
    %v308 = vld [vmem:[#allocation5 + $0x320] sm:$0xff]
    %v309 = vld [vmem:[#allocation5 + $0x328] sm:$0xff]
    %v310 = vld [vmem:[#allocation5 + $0x330] sm:$0xff]
    %v311 = vld [vmem:[#allocation5 + $0x338] sm:$0xff]
    %v312 = vld [vmem:[#allocation5 + $0x340] sm:$0xff]
    %v313 = vld [vmem:[#allocation5 + $0x348] sm:$0xff]
    %v314 = vld [vmem:[#allocation5 + $0x350] sm:$0xff]
    %v315 = vld [vmem:[#allocation5 + $0x358] sm:$0xff]
    %v316 = vld [vmem:[#allocation5 + $0x360] sm:$0xff]
    %v317 = vld [vmem:[#allocation5 + $0x368] sm:$0xff]
    %v318 = vld [vmem:[#allocation5 + $0x370] sm:$0xff]
    %v319 = vld [vmem:[#allocation5 + $0x378] sm:$0xff]
    %v320 = vld [vmem:[#allocation5 + $0x380] sm:$0xff]
    %v321 = vld [vmem:[#allocation5 + $0x388] sm:$0xff]
    %v322 = vld [vmem:[#allocation5 + $0x390] sm:$0xff]
    %v323 = vld [vmem:[#allocation5 + $0x398] sm:$0xff]
    %v324 = vld [vmem:[#allocation5 + $0x3a0] sm:$0xff]
    %v325 = vld [vmem:[#allocation5 + $0x3a8] sm:$0xff]
    %v326 = vld [vmem:[#allocation5 + $0x3b0] sm:$0xff]
    %v327 = vld [vmem:[#allocation5 + $0x3b8] sm:$0xff]
    %v328 = vld [vmem:[#allocation5 + $0x3c0] sm:$0xff]
    %v329 = vld [vmem:[#allocation5 + $0x3c8] sm:$0xff]
    %v330 = vld [vmem:[#allocation5 + $0x3d0] sm:$0xff]
    %v331 = vld [vmem:[#allocation5 + $0x3d8] sm:$0xff]
    %v332 = vld [vmem:[#allocation5 + $0x3e0] sm:$0xff]
    %v333 = vld [vmem:[#allocation5 + $0x3e8] sm:$0xff]
    %v334 = vld [vmem:[#allocation5 + $0x3f0] sm:$0xff]
    %v335 = vld [vmem:[#allocation5 + $0x3f8] sm:$0xff]
    %v336 = vsub.f32 %v208, %v80
    %v337 = vsub.f32 %v209, %v81
    %v338 = vsub.f32 %v210, %v82
    %v339 = vsub.f32 %v211, %v83
    %v340 = vsub.f32 %v212, %v84
    %v341 = vsub.f32 %v213, %v85
    %v342 = vsub.f32 %v214, %v86
    %v343 = vsub.f32 %v215, %v87
    %v344 = vsub.f32 %v216, %v88
    %v345 = vsub.f32 %v217, %v89
    %v346 = vsub.f32 %v218, %v90
    %v347 = vsub.f32 %v219, %v91
    %v348 = vsub.f32 %v220, %v92
    %v349 = vsub.f32 %v221, %v93
    %v350 = vsub.f32 %v222, %v94
    %v351 = vsub.f32 %v223, %v95
    %v352 = vsub.f32 %v224, %v96
    %v353 = vsub.f32 %v225, %v97
    %v354 = vsub.f32 %v226, %v98
    %v355 = vsub.f32 %v227, %v99
    %v356 = vsub.f32 %v228, %v100
    %v357 = vsub.f32 %v229, %v101
    %v358 = vsub.f32 %v230, %v102
    %v359 = vsub.f32 %v231, %v103
    %v360 = vsub.f32 %v232, %v104
    %v361 = vsub.f32 %v233, %v105
    %v362 = vsub.f32 %v234, %v106
    %v363 = vsub.f32 %v235, %v107
    %v364 = vsub.f32 %v236, %v108
    %v365 = vsub.f32 %v237, %v109
    %v366 = vsub.f32 %v238, %v110
    %v367 = vsub.f32 %v239, %v111
    %v368 = vsub.f32 %v240, %v112
    %v369 = vsub.f32 %v241, %v113
    %v370 = vsub.f32 %v242, %v114
    %v371 = vsub.f32 %v243, %v115
    %v372 = vsub.f32 %v244, %v116
    %v373 = vsub.f32 %v245, %v117
    %v374 = vsub.f32 %v246, %v118
    %v375 = vsub.f32 %v247, %v119
    %v376 = vsub.f32 %v248, %v120
    %v377 = vsub.f32 %v249, %v121
    %v378 = vsub.f32 %v250, %v122
    %v379 = vsub.f32 %v251, %v123
    %v380 = vsub.f32 %v252, %v124
    %v381 = vsub.f32 %v253, %v125
    %v382 = vsub.f32 %v254, %v126
    %v383 = vsub.f32 %v255, %v127
    %v384 = vsub.f32 %v256, %v128
    %v385 = vsub.f32 %v257, %v129
    %v386 = vsub.f32 %v258, %v130
    %v387 = vsub.f32 %v259, %v131
    %v388 = vsub.f32 %v260, %v132
    %v389 = vsub.f32 %v261, %v133
    %v390 = vsub.f32 %v262, %v134
    %v391 = vsub.f32 %v263, %v135
    %v392 = vsub.f32 %v264, %v136
    %v393 = vsub.f32 %v265, %v137
    %v394 = vsub.f32 %v266, %v138
    %v395 = vsub.f32 %v267, %v139
    %v396 = vsub.f32 %v268, %v140
    %v397 = vsub.f32 %v269, %v141
    %v398 = vsub.f32 %v270, %v142
    %v399 = vsub.f32 %v271, %v143
    %v400 = vsub.f32 %v272, %v144
    %v401 = vsub.f32 %v273, %v145
    %v402 = vsub.f32 %v274, %v146
    %v403 = vsub.f32 %v275, %v147
    %v404 = vsub.f32 %v276, %v148
    %v405 = vsub.f32 %v277, %v149
    %v406 = vsub.f32 %v278, %v150
    %v407 = vsub.f32 %v279, %v151
    %v408 = vsub.f32 %v280, %v152
    %v409 = vsub.f32 %v281, %v153
    %v410 = vsub.f32 %v282, %v154
    %v411 = vsub.f32 %v283, %v155
    %v412 = vsub.f32 %v284, %v156
    %v413 = vsub.f32 %v285, %v157
    %v414 = vsub.f32 %v286, %v158
    %v415 = vsub.f32 %v287, %v159
    %v416 = vsub.f32 %v288, %v160
    %v417 = vsub.f32 %v289, %v161
    %v418 = vsub.f32 %v290, %v162
    %v419 = vsub.f32 %v291, %v163
    %v420 = vsub.f32 %v292, %v164
    %v421 = vsub.f32 %v293, %v165
    %v422 = vsub.f32 %v294, %v166
    %v423 = vsub.f32 %v295, %v167
    %v424 = vsub.f32 %v296, %v168
    %v425 = vsub.f32 %v297, %v169
    %v426 = vsub.f32 %v298, %v170
    %v427 = vsub.f32 %v299, %v171
    %v428 = vsub.f32 %v300, %v172
    %v429 = vsub.f32 %v301, %v173
    %v430 = vsub.f32 %v302, %v174
    %v431 = vsub.f32 %v303, %v175
    %v432 = vsub.f32 %v304, %v176
    %v433 = vsub.f32 %v305, %v177
    %v434 = vsub.f32 %v306, %v178
    %v435 = vsub.f32 %v307, %v179
    %v436 = vsub.f32 %v308, %v180
    %v437 = vsub.f32 %v309, %v181
    %v438 = vsub.f32 %v310, %v182
    %v439 = vsub.f32 %v311, %v183
    %v440 = vsub.f32 %v312, %v184
    %v441 = vsub.f32 %v313, %v185
    %v442 = vsub.f32 %v314, %v186
    %v443 = vsub.f32 %v315, %v187
    %v444 = vsub.f32 %v316, %v188
    %v445 = vsub.f32 %v317, %v189
    %v446 = vsub.f32 %v318, %v190
    %v447 = vsub.f32 %v319, %v191
    %v448 = vsub.f32 %v320, %v192
    %v449 = vsub.f32 %v321, %v193
    %v450 = vsub.f32 %v322, %v194
    %v451 = vsub.f32 %v323, %v195
    %v452 = vsub.f32 %v324, %v196
    %v453 = vsub.f32 %v325, %v197
    %v454 = vsub.f32 %v326, %v198
    %v455 = vsub.f32 %v327, %v199
    %v456 = vsub.f32 %v328, %v200
    %v457 = vsub.f32 %v329, %v201
    %v458 = vsub.f32 %v330, %v202
    %v459 = vsub.f32 %v331, %v203
    %v460 = vsub.f32 %v332, %v204
    %v461 = vsub.f32 %v333, %v205
    %v462 = vsub.f32 %v334, %v206
    %v463 = vsub.f32 %v335, %v207
    %v464 = vmul.f32 %v336, %v336
    %v465 = vmul.f32 %v337, %v337
    %v466 = vmul.f32 %v338, %v338
    %v467 = vmul.f32 %v339, %v339
    %v468 = vmul.f32 %v340, %v340
    %v469 = vmul.f32 %v341, %v341
    %v470 = vmul.f32 %v342, %v342
    %v471 = vmul.f32 %v343, %v343
    %v472 = vmul.f32 %v344, %v344
    %v473 = vmul.f32 %v345, %v345
    %v474 = vmul.f32 %v346, %v346
    %v475 = vmul.f32 %v347, %v347
    %v476 = vmul.f32 %v348, %v348
    %v477 = vmul.f32 %v349, %v349
    %v478 = vmul.f32 %v350, %v350
    %v479 = vmul.f32 %v351, %v351
    %v480 = vmul.f32 %v352, %v352
    %v481 = vmul.f32 %v353, %v353
    %v482 = vmul.f32 %v354, %v354
    %v483 = vmul.f32 %v355, %v355
    %v484 = vmul.f32 %v356, %v356
    %v485 = vmul.f32 %v357, %v357
    %v486 = vmul.f32 %v358, %v358
    %v487 = vmul.f32 %v359, %v359
    %v488 = vmul.f32 %v360, %v360
    %v489 = vmul.f32 %v361, %v361
    %v490 = vmul.f32 %v362, %v362
    %v491 = vmul.f32 %v363, %v363
    %v492 = vmul.f32 %v364, %v364
    %v493 = vmul.f32 %v365, %v365
    %v494 = vmul.f32 %v366, %v366
    %v495 = vmul.f32 %v367, %v367
    %v496 = vmul.f32 %v368, %v368
    %v497 = vmul.f32 %v369, %v369
    %v498 = vmul.f32 %v370, %v370
    %v499 = vmul.f32 %v371, %v371
    %v500 = vmul.f32 %v372, %v372
    %v501 = vmul.f32 %v373, %v373
    %v502 = vmul.f32 %v374, %v374
    %v503 = vmul.f32 %v375, %v375
    %v504 = vmul.f32 %v376, %v376
    %v505 = vmul.f32 %v377, %v377
    %v506 = vmul.f32 %v378, %v378
    %v507 = vmul.f32 %v379, %v379
    %v508 = vmul.f32 %v380, %v380
    %v509 = vmul.f32 %v381, %v381
    %v510 = vmul.f32 %v382, %v382
    %v511 = vmul.f32 %v383, %v383
    %v512 = vmul.f32 %v384, %v384
    %v513 = vmul.f32 %v385, %v385
    %v514 = vmul.f32 %v386, %v386
    %v515 = vmul.f32 %v387, %v387
    %v516 = vmul.f32 %v388, %v388
    %v517 = vmul.f32 %v389, %v389
    %v518 = vmul.f32 %v390, %v390
    %v519 = vmul.f32 %v391, %v391
    %v520 = vmul.f32 %v392, %v392
    %v521 = vmul.f32 %v393, %v393
    %v522 = vmul.f32 %v394, %v394
    %v523 = vmul.f32 %v395, %v395
    %v524 = vmul.f32 %v396, %v396
    %v525 = vmul.f32 %v397, %v397
    %v526 = vmul.f32 %v398, %v398
    %v527 = vmul.f32 %v399, %v399
    %v528 = vmul.f32 %v400, %v400
    %v529 = vmul.f32 %v401, %v401
    %v530 = vmul.f32 %v402, %v402
    %v531 = vmul.f32 %v403, %v403
    %v532 = vmul.f32 %v404, %v404
    %v533 = vmul.f32 %v405, %v405
    %v534 = vmul.f32 %v406, %v406
    %v535 = vmul.f32 %v407, %v407
    %v536 = vmul.f32 %v408, %v408
    %v537 = vmul.f32 %v409, %v409
    %v538 = vmul.f32 %v410, %v410
    %v539 = vmul.f32 %v411, %v411
    %v540 = vmul.f32 %v412, %v412
    %v541 = vmul.f32 %v413, %v413
    %v542 = vmul.f32 %v414, %v414
    %v543 = vmul.f32 %v415, %v415
    %v544 = vmul.f32 %v416, %v416
    %v545 = vmul.f32 %v417, %v417
    %v546 = vmul.f32 %v418, %v418
    %v547 = vmul.f32 %v419, %v419
    %v548 = vmul.f32 %v420, %v420
    %v549 = vmul.f32 %v421, %v421
    %v550 = vmul.f32 %v422, %v422
    %v551 = vmul.f32 %v423, %v423
    %v552 = vmul.f32 %v424, %v424
    %v553 = vmul.f32 %v425, %v425
    %v554 = vmul.f32 %v426, %v426
    %v555 = vmul.f32 %v427, %v427
    %v556 = vmul.f32 %v428, %v428
    %v557 = vmul.f32 %v429, %v429
    %v558 = vmul.f32 %v430, %v430
    %v559 = vmul.f32 %v431, %v431
    %v560 = vmul.f32 %v432, %v432
    %v561 = vmul.f32 %v433, %v433
    %v562 = vmul.f32 %v434, %v434
    %v563 = vmul.f32 %v435, %v435
    %v564 = vmul.f32 %v436, %v436
    %v565 = vmul.f32 %v437, %v437
    %v566 = vmul.f32 %v438, %v438
    %v567 = vmul.f32 %v439, %v439
    %v568 = vmul.f32 %v440, %v440
    %v569 = vmul.f32 %v441, %v441
    %v570 = vmul.f32 %v442, %v442
    %v571 = vmul.f32 %v443, %v443
    %v572 = vmul.f32 %v444, %v444
    %v573 = vmul.f32 %v445, %v445
    %v574 = vmul.f32 %v446, %v446
    %v575 = vmul.f32 %v447, %v447
    %v576 = vmul.f32 %v448, %v448
    %v577 = vmul.f32 %v449, %v449
    %v578 = vmul.f32 %v450, %v450
    %v579 = vmul.f32 %v451, %v451
    %v580 = vmul.f32 %v452, %v452
    %v581 = vmul.f32 %v453, %v453
    %v582 = vmul.f32 %v454, %v454
    %v583 = vmul.f32 %v455, %v455
    %v584 = vmul.f32 %v456, %v456
    %v585 = vmul.f32 %v457, %v457
    %v586 = vmul.f32 %v458, %v458
    %v587 = vmul.f32 %v459, %v459
    %v588 = vmul.f32 %v460, %v460
    %v589 = vmul.f32 %v461, %v461
    %v590 = vmul.f32 %v462, %v462
    %v591 = vmul.f32 %v463, %v463
    %v592 = vld [vmem:[#allocation2] sm:$0xff]
    %v593 = vadd.f32 %v464, %v465
    %v594 = vadd.f32 %v593, %v466
    %v595 = vadd.f32 %v594, %v467
    %v596 = vadd.f32 %v595, %v468
    %v597 = vadd.f32 %v596, %v469
    %v598 = vadd.f32 %v597, %v470
    %v599 = vadd.f32 %v598, %v471
    %v600 = vadd.f32 %v599, %v472
    %v601 = vadd.f32 %v600, %v473
    %v602 = vadd.f32 %v601, %v474
    %v603 = vadd.f32 %v602, %v475
    %v604 = vadd.f32 %v603, %v476
    %v605 = vadd.f32 %v604, %v477
    %v606 = vadd.f32 %v605, %v478
    %v607 = vadd.f32 %v606, %v479
    %v608 = vadd.f32 %v607, %v480
    %v609 = vadd.f32 %v608, %v481
    %v610 = vadd.f32 %v609, %v482
    %v611 = vadd.f32 %v610, %v483
    %v612 = vadd.f32 %v611, %v484
    %v613 = vadd.f32 %v612, %v485
    %v614 = vadd.f32 %v613, %v486
    %v615 = vadd.f32 %v614, %v487
    %v616 = vadd.f32 %v615, %v488
    %v617 = vadd.f32 %v616, %v489
    %v618 = vadd.f32 %v617, %v490
    %v619 = vadd.f32 %v618, %v491
    %v620 = vadd.f32 %v619, %v492
    %v621 = vadd.f32 %v620, %v493
    %v622 = vadd.f32 %v621, %v494
    %v623 = vadd.f32 %v622, %v495
    %v624 = vadd.f32 %v623, %v496
    %v625 = vadd.f32 %v624, %v497
    %v626 = vadd.f32 %v625, %v498
    %v627 = vadd.f32 %v626, %v499
    %v628 = vadd.f32 %v627, %v500
    %v629 = vadd.f32 %v628, %v501
    %v630 = vadd.f32 %v629, %v502
    %v631 = vadd.f32 %v630, %v503
    %v632 = vadd.f32 %v631, %v504
    %v633 = vadd.f32 %v632, %v505
    %v634 = vadd.f32 %v633, %v506
    %v635 = vadd.f32 %v634, %v507
    %v636 = vadd.f32 %v635, %v508
    %v637 = vadd.f32 %v636, %v509
    %v638 = vadd.f32 %v637, %v510
    %v639 = vadd.f32 %v638, %v511
    %v640 = vadd.f32 %v639, %v512
    %v641 = vadd.f32 %v640, %v513
    %v642 = vadd.f32 %v641, %v514
    %v643 = vadd.f32 %v642, %v515
    %v644 = vadd.f32 %v643, %v516
    %v645 = vadd.f32 %v644, %v517
    %v646 = vadd.f32 %v645, %v518
    %v647 = vadd.f32 %v646, %v519
    %v648 = vadd.f32 %v647, %v520
    %v649 = vadd.f32 %v648, %v521
    %v650 = vadd.f32 %v649, %v522
    %v651 = vadd.f32 %v650, %v523
    %v652 = vadd.f32 %v651, %v524
    %v653 = vadd.f32 %v652, %v525
    %v654 = vadd.f32 %v653, %v526
    %v655 = vadd.f32 %v654, %v527
    %v656 = vadd.f32 %v655, %v528
    %v657 = vadd.f32 %v656, %v529
    %v658 = vadd.f32 %v657, %v530
    %v659 = vadd.f32 %v658, %v531
    %v660 = vadd.f32 %v659, %v532
    %v661 = vadd.f32 %v660, %v533
    %v662 = vadd.f32 %v661, %v534
    %v663 = vadd.f32 %v662, %v535
    %v664 = vadd.f32 %v663, %v536
    %v665 = vadd.f32 %v664, %v537
    %v666 = vadd.f32 %v665, %v538
    %v667 = vadd.f32 %v666, %v539
    %v668 = vadd.f32 %v667, %v540
    %v669 = vadd.f32 %v668, %v541
    %v670 = vadd.f32 %v669, %v542
    %v671 = vadd.f32 %v670, %v543
    %v672 = vadd.f32 %v671, %v544
    %v673 = vadd.f32 %v672, %v545
    %v674 = vadd.f32 %v673, %v546
    %v675 = vadd.f32 %v674, %v547
    %v676 = vadd.f32 %v675, %v548
    %v677 = vadd.f32 %v676, %v549
    %v678 = vadd.f32 %v677, %v550
    %v679 = vadd.f32 %v678, %v551
    %v680 = vadd.f32 %v679, %v552
    %v681 = vadd.f32 %v680, %v553
    %v682 = vadd.f32 %v681, %v554
    %v683 = vadd.f32 %v682, %v555
    %v684 = vadd.f32 %v683, %v556
    %v685 = vadd.f32 %v684, %v557
    %v686 = vadd.f32 %v685, %v558
    %v687 = vadd.f32 %v686, %v559
    %v688 = vadd.f32 %v687, %v560
    %v689 = vadd.f32 %v688, %v561
    %v690 = vadd.f32 %v689, %v562
    %v691 = vadd.f32 %v690, %v563
    %v692 = vadd.f32 %v691, %v564
    %v693 = vadd.f32 %v692, %v565
    %v694 = vadd.f32 %v693, %v566
    %v695 = vadd.f32 %v694, %v567
    %v696 = vadd.f32 %v695, %v568
    %v697 = vadd.f32 %v696, %v569
    %v698 = vadd.f32 %v697, %v570
    %v699 = vadd.f32 %v698, %v571
    %v700 = vadd.f32 %v699, %v572
    %v701 = vadd.f32 %v700, %v573
    %v702 = vadd.f32 %v701, %v574
    %v703 = vadd.f32 %v702, %v575
    %v704 = vadd.f32 %v703, %v576
    %v705 = vadd.f32 %v704, %v577
    %v706 = vadd.f32 %v705, %v578
    %v707 = vadd.f32 %v706, %v579
    %v708 = vadd.f32 %v707, %v580
    %v709 = vadd.f32 %v708, %v581
    %v710 = vadd.f32 %v709, %v582
    %v711 = vadd.f32 %v710, %v583
    %v712 = vadd.f32 %v711, %v584
    %v713 = vadd.f32 %v712, %v585
    %v714 = vadd.f32 %v713, %v586
    %v715 = vadd.f32 %v714, %v587
    %v716 = vadd.f32 %v715, %v588
    %v717 = vadd.f32 %v716, %v589
    %v718 = vadd.f32 %v717, %v590
    %v719 = vadd.f32 %v718, %v591
    %v720 = vadd.f32 %v592, %v719
    %721 = vst [vmem:[#allocation2] sm:$0xff] %v720
    %v722 = vld [vmem:[#allocation8] sm:$0xff]
    %v723 = vld [vmem:[#allocation8 + $0x8] sm:$0xff]
    %v724 = vld [vmem:[#allocation8 + $0x10] sm:$0xff]
    %v725 = vld [vmem:[#allocation8 + $0x18] sm:$0xff]
    %v726 = vld [vmem:[#allocation8 + $0x20] sm:$0xff]
    %v727 = vld [vmem:[#allocation8 + $0x28] sm:$0xff]
    %v728 = vld [vmem:[#allocation8 + $0x30] sm:$0xff]
    %v729 = vld [vmem:[#allocation8 + $0x38] sm:$0xff]
    %v730 = vld [vmem:[#allocation8 + $0x40] sm:$0xff]
    %v731 = vld [vmem:[#allocation8 + $0x48] sm:$0xff]
    %v732 = vld [vmem:[#allocation8 + $0x50] sm:$0xff]
    %v733 = vld [vmem:[#allocation8 + $0x58] sm:$0xff]
    %v734 = vld [vmem:[#allocation8 + $0x60] sm:$0xff]
    %v735 = vld [vmem:[#allocation8 + $0x68] sm:$0xff]
    %v736 = vld [vmem:[#allocation8 + $0x70] sm:$0xff]
    %v737 = vld [vmem:[#allocation8 + $0x78] sm:$0xff]
    %v738 = vld [vmem:[#allocation8 + $0x80] sm:$0xff]
    %v739 = vld [vmem:[#allocation8 + $0x88] sm:$0xff]
    %v740 = vld [vmem:[#allocation8 + $0x90] sm:$0xff]
    %v741 = vld [vmem:[#allocation8 + $0x98] sm:$0xff]
    %v742 = vld [vmem:[#allocation8 + $0xa0] sm:$0xff]
    %v743 = vld [vmem:[#allocation8 + $0xa8] sm:$0xff]
    %v744 = vld [vmem:[#allocation8 + $0xb0] sm:$0xff]
    %v745 = vld [vmem:[#allocation8 + $0xb8] sm:$0xff]
    %v746 = vld [vmem:[#allocation8 + $0xc0] sm:$0xff]
    %v747 = vld [vmem:[#allocation8 + $0xc8] sm:$0xff]
    %v748 = vld [vmem:[#allocation8 + $0xd0] sm:$0xff]
    %v749 = vld [vmem:[#allocation8 + $0xd8] sm:$0xff]
    %v750 = vld [vmem:[#allocation8 + $0xe0] sm:$0xff]
    %v751 = vld [vmem:[#allocation8 + $0xe8] sm:$0xff]
    %v752 = vld [vmem:[#allocation8 + $0xf0] sm:$0xff]
    %v753 = vld [vmem:[#allocation8 + $0xf8] sm:$0xff]
    %v754 = vld [vmem:[#allocation8 + $0x100] sm:$0xff]
    %v755 = vld [vmem:[#allocation8 + $0x108] sm:$0xff]
    %v756 = vld [vmem:[#allocation8 + $0x110] sm:$0xff]
    %v757 = vld [vmem:[#allocation8 + $0x118] sm:$0xff]
    %v758 = vld [vmem:[#allocation8 + $0x120] sm:$0xff]
    %v759 = vld [vmem:[#allocation8 + $0x128] sm:$0xff]
    %v760 = vld [vmem:[#allocation8 + $0x130] sm:$0xff]
    %v761 = vld [vmem:[#allocation8 + $0x138] sm:$0xff]
    %v762 = vld [vmem:[#allocation8 + $0x140] sm:$0xff]
    %v763 = vld [vmem:[#allocation8 + $0x148] sm:$0xff]
    %v764 = vld [vmem:[#allocation8 + $0x150] sm:$0xff]
    %v765 = vld [vmem:[#allocation8 + $0x158] sm:$0xff]
    %v766 = vld [vmem:[#allocation8 + $0x160] sm:$0xff]
    %v767 = vld [vmem:[#allocation8 + $0x168] sm:$0xff]
    %v768 = vld [vmem:[#allocation8 + $0x170] sm:$0xff]
    %v769 = vld [vmem:[#allocation8 + $0x178] sm:$0xff]
    %v770 = vld [vmem:[#allocation8 + $0x180] sm:$0xff]
    %v771 = vld [vmem:[#allocation8 + $0x188] sm:$0xff]
    %v772 = vld [vmem:[#allocation8 + $0x190] sm:$0xff]
    %v773 = vld [vmem:[#allocation8 + $0x198] sm:$0xff]
    %v774 = vld [vmem:[#allocation8 + $0x1a0] sm:$0xff]
    %v775 = vld [vmem:[#allocation8 + $0x1a8] sm:$0xff]
    %v776 = vld [vmem:[#allocation8 + $0x1b0] sm:$0xff]
    %v777 = vld [vmem:[#allocation8 + $0x1b8] sm:$0xff]
    %v778 = vld [vmem:[#allocation8 + $0x1c0] sm:$0xff]
    %v779 = vld [vmem:[#allocation8 + $0x1c8] sm:$0xff]
    %v780 = vld [vmem:[#allocation8 + $0x1d0] sm:$0xff]
    %v781 = vld [vmem:[#allocation8 + $0x1d8] sm:$0xff]
    %v782 = vld [vmem:[#allocation8 + $0x1e0] sm:$0xff]
    %v783 = vld [vmem:[#allocation8 + $0x1e8] sm:$0xff]
    %v784 = vld [vmem:[#allocation8 + $0x1f0] sm:$0xff]
    %v785 = vld [vmem:[#allocation8 + $0x1f8] sm:$0xff]
    %v786 = vld [vmem:[#allocation8 + $0x200] sm:$0xff]
    %v787 = vld [vmem:[#allocation8 + $0x208] sm:$0xff]
    %v788 = vld [vmem:[#allocation8 + $0x210] sm:$0xff]
    %v789 = vld [vmem:[#allocation8 + $0x218] sm:$0xff]
    %v790 = vld [vmem:[#allocation8 + $0x220] sm:$0xff]
    %v791 = vld [vmem:[#allocation8 + $0x228] sm:$0xff]
    %v792 = vld [vmem:[#allocation8 + $0x230] sm:$0xff]
    %v793 = vld [vmem:[#allocation8 + $0x238] sm:$0xff]
    %v794 = vld [vmem:[#allocation8 + $0x240] sm:$0xff]
    %v795 = vld [vmem:[#allocation8 + $0x248] sm:$0xff]
    %v796 = vld [vmem:[#allocation8 + $0x250] sm:$0xff]
    %v797 = vld [vmem:[#allocation8 + $0x258] sm:$0xff]
    %v798 = vld [vmem:[#allocation8 + $0x260] sm:$0xff]
    %v799 = vld [vmem:[#allocation8 + $0x268] sm:$0xff]
    %v800 = vld [vmem:[#allocation8 + $0x270] sm:$0xff]
    %v801 = vld [vmem:[#allocation8 + $0x278] sm:$0xff]
    %v802 = vld [vmem:[#allocation8 + $0x280] sm:$0xff]
    %v803 = vld [vmem:[#allocation8 + $0x288] sm:$0xff]
    %v804 = vld [vmem:[#allocation8 + $0x290] sm:$0xff]
    %v805 = vld [vmem:[#allocation8 + $0x298] sm:$0xff]
    %v806 = vld [vmem:[#allocation8 + $0x2a0] sm:$0xff]
    %v807 = vld [vmem:[#allocation8 + $0x2a8] sm:$0xff]
    %v808 = vld [vmem:[#allocation8 + $0x2b0] sm:$0xff]
    %v809 = vld [vmem:[#allocation8 + $0x2b8] sm:$0xff]
    %v810 = vld [vmem:[#allocation8 + $0x2c0] sm:$0xff]
    %v811 = vld [vmem:[#allocation8 + $0x2c8] sm:$0xff]
    %v812 = vld [vmem:[#allocation8 + $0x2d0] sm:$0xff]
    %v813 = vld [vmem:[#allocation8 + $0x2d8] sm:$0xff]
    %v814 = vld [vmem:[#allocation8 + $0x2e0] sm:$0xff]
    %v815 = vld [vmem:[#allocation8 + $0x2e8] sm:$0xff]
    %v816 = vld [vmem:[#allocation8 + $0x2f0] sm:$0xff]
    %v817 = vld [vmem:[#allocation8 + $0x2f8] sm:$0xff]
    %v818 = vld [vmem:[#allocation8 + $0x300] sm:$0xff]
    %v819 = vld [vmem:[#allocation8 + $0x308] sm:$0xff]
    %v820 = vld [vmem:[#allocation8 + $0x310] sm:$0xff]
    %v821 = vld [vmem:[#allocation8 + $0x318] sm:$0xff]
    %v822 = vld [vmem:[#allocation8 + $0x320] sm:$0xff]
    %v823 = vld [vmem:[#allocation8 + $0x328] sm:$0xff]
    %v824 = vld [vmem:[#allocation8 + $0x330] sm:$0xff]
    %v825 = vld [vmem:[#allocation8 + $0x338] sm:$0xff]
    %v826 = vld [vmem:[#allocation8 + $0x340] sm:$0xff]
    %v827 = vld [vmem:[#allocation8 + $0x348] sm:$0xff]
    %v828 = vld [vmem:[#allocation8 + $0x350] sm:$0xff]
    %v829 = vld [vmem:[#allocation8 + $0x358] sm:$0xff]
    %v830 = vld [vmem:[#allocation8 + $0x360] sm:$0xff]
    %v831 = vld [vmem:[#allocation8 + $0x368] sm:$0xff]
    %v832 = vld [vmem:[#allocation8 + $0x370] sm:$0xff]
    %v833 = vld [vmem:[#allocation8 + $0x378] sm:$0xff]
    %v834 = vld [vmem:[#allocation8 + $0x380] sm:$0xff]
    %v835 = vld [vmem:[#allocation8 + $0x388] sm:$0xff]
    %v836 = vld [vmem:[#allocation8 + $0x390] sm:$0xff]
    %v837 = vld [vmem:[#allocation8 + $0x398] sm:$0xff]
    %v838 = vld [vmem:[#allocation8 + $0x3a0] sm:$0xff]
    %v839 = vld [vmem:[#allocation8 + $0x3a8] sm:$0xff]
    %v840 = vld [vmem:[#allocation8 + $0x3b0] sm:$0xff]
    %v841 = vld [vmem:[#allocation8 + $0x3b8] sm:$0xff]
    %v842 = vld [vmem:[#allocation8 + $0x3c0] sm:$0xff]
    %v843 = vld [vmem:[#allocation8 + $0x3c8] sm:$0xff]
    %v844 = vld [vmem:[#allocation8 + $0x3d0] sm:$0xff]
    %v845 = vld [vmem:[#allocation8 + $0x3d8] sm:$0xff]
    %v846 = vld [vmem:[#allocation8 + $0x3e0] sm:$0xff]
    %v847 = vld [vmem:[#allocation8 + $0x3e8] sm:$0xff]
    %v848 = vld [vmem:[#allocation8 + $0x3f0] sm:$0xff]
    %v849 = vld [vmem:[#allocation8 + $0x3f8] sm:$0xff]
    %v850 = vsub.f32 %v722, %v80
    %v851 = vsub.f32 %v723, %v81
    %v852 = vsub.f32 %v724, %v82
    %v853 = vsub.f32 %v725, %v83
    %v854 = vsub.f32 %v726, %v84
    %v855 = vsub.f32 %v727, %v85
    %v856 = vsub.f32 %v728, %v86
    %v857 = vsub.f32 %v729, %v87
    %v858 = vsub.f32 %v730, %v88
    %v859 = vsub.f32 %v731, %v89
    %v860 = vsub.f32 %v732, %v90
    %v861 = vsub.f32 %v733, %v91
    %v862 = vsub.f32 %v734, %v92
    %v863 = vsub.f32 %v735, %v93
    %v864 = vsub.f32 %v736, %v94
    %v865 = vsub.f32 %v737, %v95
    %v866 = vsub.f32 %v738, %v96
    %v867 = vsub.f32 %v739, %v97
    %v868 = vsub.f32 %v740, %v98
    %v869 = vsub.f32 %v741, %v99
    %v870 = vsub.f32 %v742, %v100
    %v871 = vsub.f32 %v743, %v101
    %v872 = vsub.f32 %v744, %v102
    %v873 = vsub.f32 %v745, %v103
    %v874 = vsub.f32 %v746, %v104
    %v875 = vsub.f32 %v747, %v105
    %v876 = vsub.f32 %v748, %v106
    %v877 = vsub.f32 %v749, %v107
    %v878 = vsub.f32 %v750, %v108
    %v879 = vsub.f32 %v751, %v109
    %v880 = vsub.f32 %v752, %v110
    %v881 = vsub.f32 %v753, %v111
    %v882 = vsub.f32 %v754, %v112
    %v883 = vsub.f32 %v755, %v113
    %v884 = vsub.f32 %v756, %v114
    %v885 = vsub.f32 %v757, %v115
    %v886 = vsub.f32 %v758, %v116
    %v887 = vsub.f32 %v759, %v117
    %v888 = vsub.f32 %v760, %v118
    %v889 = vsub.f32 %v761, %v119
    %v890 = vsub.f32 %v762, %v120
    %v891 = vsub.f32 %v763, %v121
    %v892 = vsub.f32 %v764, %v122
    %v893 = vsub.f32 %v765, %v123
    %v894 = vsub.f32 %v766, %v124
    %v895 = vsub.f32 %v767, %v125
    %v896 = vsub.f32 %v768, %v126
    %v897 = vsub.f32 %v769, %v127
    %v898 = vsub.f32 %v770, %v128
    %v899 = vsub.f32 %v771, %v129
    %v900 = vsub.f32 %v772, %v130
    %v901 = vsub.f32 %v773, %v131
    %v902 = vsub.f32 %v774, %v132
    %v903 = vsub.f32 %v775, %v133
    %v904 = vsub.f32 %v776, %v134
    %v905 = vsub.f32 %v777, %v135
    %v906 = vsub.f32 %v778, %v136
    %v907 = vsub.f32 %v779, %v137
    %v908 = vsub.f32 %v780, %v138
    %v909 = vsub.f32 %v781, %v139
    %v910 = vsub.f32 %v782, %v140
    %v911 = vsub.f32 %v783, %v141
    %v912 = vsub.f32 %v784, %v142
    %v913 = vsub.f32 %v785, %v143
    %v914 = vsub.f32 %v786, %v144
    %v915 = vsub.f32 %v787, %v145
    %v916 = vsub.f32 %v788, %v146
    %v917 = vsub.f32 %v789, %v147
    %v918 = vsub.f32 %v790, %v148
    %v919 = vsub.f32 %v791, %v149
    %v920 = vsub.f32 %v792, %v150
    %v921 = vsub.f32 %v793, %v151
    %v922 = vsub.f32 %v794, %v152
    %v923 = vsub.f32 %v795, %v153
    %v924 = vsub.f32 %v796, %v154
    %v925 = vsub.f32 %v797, %v155
    %v926 = vsub.f32 %v798, %v156
    %v927 = vsub.f32 %v799, %v157
    %v928 = vsub.f32 %v800, %v158
    %v929 = vsub.f32 %v801, %v159
    %v930 = vsub.f32 %v802, %v160
    %v931 = vsub.f32 %v803, %v161
    %v932 = vsub.f32 %v804, %v162
    %v933 = vsub.f32 %v805, %v163
    %v934 = vsub.f32 %v806, %v164
    %v935 = vsub.f32 %v807, %v165
    %v936 = vsub.f32 %v808, %v166
    %v937 = vsub.f32 %v809, %v167
    %v938 = vsub.f32 %v810, %v168
    %v939 = vsub.f32 %v811, %v169
    %v940 = vsub.f32 %v812, %v170
    %v941 = vsub.f32 %v813, %v171
    %v942 = vsub.f32 %v814, %v172
    %v943 = vsub.f32 %v815, %v173
    %v944 = vsub.f32 %v816, %v174
    %v945 = vsub.f32 %v817, %v175
    %v946 = vsub.f32 %v818, %v176
    %v947 = vsub.f32 %v819, %v177
    %v948 = vsub.f32 %v820, %v178
    %v949 = vsub.f32 %v821, %v179
    %v950 = vsub.f32 %v822, %v180
    %v951 = vsub.f32 %v823, %v181
    %v952 = vsub.f32 %v824, %v182
    %v953 = vsub.f32 %v825, %v183
    %v954 = vsub.f32 %v826, %v184
    %v955 = vsub.f32 %v827, %v185
    %v956 = vsub.f32 %v828, %v186
    %v957 = vsub.f32 %v829, %v187
    %v958 = vsub.f32 %v830, %v188
    %v959 = vsub.f32 %v831, %v189
    %v960 = vsub.f32 %v832, %v190
    %v961 = vsub.f32 %v833, %v191
    %v962 = vsub.f32 %v834, %v192
    %v963 = vsub.f32 %v835, %v193
    %v964 = vsub.f32 %v836, %v194
    %v965 = vsub.f32 %v837, %v195
    %v966 = vsub.f32 %v838, %v196
    %v967 = vsub.f32 %v839, %v197
    %v968 = vsub.f32 %v840, %v198
    %v969 = vsub.f32 %v841, %v199
    %v970 = vsub.f32 %v842, %v200
    %v971 = vsub.f32 %v843, %v201
    %v972 = vsub.f32 %v844, %v202
    %v973 = vsub.f32 %v845, %v203
    %v974 = vsub.f32 %v846, %v204
    %v975 = vsub.f32 %v847, %v205
    %v976 = vsub.f32 %v848, %v206
    %v977 = vsub.f32 %v849, %v207
    %v978 = vmul.f32 %v850, %v850
    %v979 = vmul.f32 %v851, %v851
    %v980 = vmul.f32 %v852, %v852
    %v981 = vmul.f32 %v853, %v853
    %v982 = vmul.f32 %v854, %v854
    %v983 = vmul.f32 %v855, %v855
    %v984 = vmul.f32 %v856, %v856
    %v985 = vmul.f32 %v857, %v857
    %v986 = vmul.f32 %v858, %v858
    %v987 = vmul.f32 %v859, %v859
    %v988 = vmul.f32 %v860, %v860
    %v989 = vmul.f32 %v861, %v861
    %v990 = vmul.f32 %v862, %v862
    %v991 = vmul.f32 %v863, %v863
    %v992 = vmul.f32 %v864, %v864
    %v993 = vmul.f32 %v865, %v865
    %v994 = vmul.f32 %v866, %v866
    %v995 = vmul.f32 %v867, %v867
    %v996 = vmul.f32 %v868, %v868
    %v997 = vmul.f32 %v869, %v869
    %v998 = vmul.f32 %v870, %v870
    %v999 = vmul.f32 %v871, %v871
    %v1000 = vmul.f32 %v872, %v872
    %v1001 = vmul.f32 %v873, %v873
    %v1002 = vmul.f32 %v874, %v874
    %v1003 = vmul.f32 %v875, %v875
    %v1004 = vmul.f32 %v876, %v876
    %v1005 = vmul.f32 %v877, %v877
    %v1006 = vmul.f32 %v878, %v878
    %v1007 = vmul.f32 %v879, %v879
    %v1008 = vmul.f32 %v880, %v880
    %v1009 = vmul.f32 %v881, %v881
    %v1010 = vmul.f32 %v882, %v882
    %v1011 = vmul.f32 %v883, %v883
    %v1012 = vmul.f32 %v884, %v884
    %v1013 = vmul.f32 %v885, %v885
    %v1014 = vmul.f32 %v886, %v886
    %v1015 = vmul.f32 %v887, %v887
    %v1016 = vmul.f32 %v888, %v888
    %v1017 = vmul.f32 %v889, %v889
    %v1018 = vmul.f32 %v890, %v890
    %v1019 = vmul.f32 %v891, %v891
    %v1020 = vmul.f32 %v892, %v892
    %v1021 = vmul.f32 %v893, %v893
    %v1022 = vmul.f32 %v894, %v894
    %v1023 = vmul.f32 %v895, %v895
    %v1024 = vmul.f32 %v896, %v896
    %v1025 = vmul.f32 %v897, %v897
    %v1026 = vmul.f32 %v898, %v898
    %v1027 = vmul.f32 %v899, %v899
    %v1028 = vmul.f32 %v900, %v900
    %v1029 = vmul.f32 %v901, %v901
    %v1030 = vmul.f32 %v902, %v902
    %v1031 = vmul.f32 %v903, %v903
    %v1032 = vmul.f32 %v904, %v904
    %v1033 = vmul.f32 %v905, %v905
    %v1034 = vmul.f32 %v906, %v906
    %v1035 = vmul.f32 %v907, %v907
    %v1036 = vmul.f32 %v908, %v908
    %v1037 = vmul.f32 %v909, %v909
    %v1038 = vmul.f32 %v910, %v910
    %v1039 = vmul.f32 %v911, %v911
    %v1040 = vmul.f32 %v912, %v912
    %v1041 = vmul.f32 %v913, %v913
    %v1042 = vmul.f32 %v914, %v914
    %v1043 = vmul.f32 %v915, %v915
    %v1044 = vmul.f32 %v916, %v916
    %v1045 = vmul.f32 %v917, %v917
    %v1046 = vmul.f32 %v918, %v918
    %v1047 = vmul.f32 %v919, %v919
    %v1048 = vmul.f32 %v920, %v920
    %v1049 = vmul.f32 %v921, %v921
    %v1050 = vmul.f32 %v922, %v922
    %v1051 = vmul.f32 %v923, %v923
    %v1052 = vmul.f32 %v924, %v924
    %v1053 = vmul.f32 %v925, %v925
    %v1054 = vmul.f32 %v926, %v926
    %v1055 = vmul.f32 %v927, %v927
    %v1056 = vmul.f32 %v928, %v928
    %v1057 = vmul.f32 %v929, %v929
    %v1058 = vmul.f32 %v930, %v930
    %v1059 = vmul.f32 %v931, %v931
    %v1060 = vmul.f32 %v932, %v932
    %v1061 = vmul.f32 %v933, %v933
    %v1062 = vmul.f32 %v934, %v934
    %v1063 = vmul.f32 %v935, %v935
    %v1064 = vmul.f32 %v936, %v936
    %v1065 = vmul.f32 %v937, %v937
    %v1066 = vmul.f32 %v938, %v938
    %v1067 = vmul.f32 %v939, %v939
    %v1068 = vmul.f32 %v940, %v940
    %v1069 = vmul.f32 %v941, %v941
    %v1070 = vmul.f32 %v942, %v942
    %v1071 = vmul.f32 %v943, %v943
    %v1072 = vmul.f32 %v944, %v944
    %v1073 = vmul.f32 %v945, %v945
    %v1074 = vmul.f32 %v946, %v946
    %v1075 = vmul.f32 %v947, %v947
    %v1076 = vmul.f32 %v948, %v948
    %v1077 = vmul.f32 %v949, %v949
    %v1078 = vmul.f32 %v950, %v950
    %v1079 = vmul.f32 %v951, %v951
    %v1080 = vmul.f32 %v952, %v952
    %v1081 = vmul.f32 %v953, %v953
    %v1082 = vmul.f32 %v954, %v954
    %v1083 = vmul.f32 %v955, %v955
    %v1084 = vmul.f32 %v956, %v956
    %v1085 = vmul.f32 %v957, %v957
    %v1086 = vmul.f32 %v958, %v958
    %v1087 = vmul.f32 %v959, %v959
    %v1088 = vmul.f32 %v960, %v960
    %v1089 = vmul.f32 %v961, %v961
    %v1090 = vmul.f32 %v962, %v962
    %v1091 = vmul.f32 %v963, %v963
    %v1092 = vmul.f32 %v964, %v964
    %v1093 = vmul.f32 %v965, %v965
    %v1094 = vmul.f32 %v966, %v966
    %v1095 = vmul.f32 %v967, %v967
    %v1096 = vmul.f32 %v968, %v968
    %v1097 = vmul.f32 %v969, %v969
    %v1098 = vmul.f32 %v970, %v970
    %v1099 = vmul.f32 %v971, %v971
    %v1100 = vmul.f32 %v972, %v972
    %v1101 = vmul.f32 %v973, %v973
    %v1102 = vmul.f32 %v974, %v974
    %v1103 = vmul.f32 %v975, %v975
    %v1104 = vmul.f32 %v976, %v976
    %v1105 = vmul.f32 %v977, %v977
    %v1106 = vld [vmem:[#allocation3] sm:$0xff]
    %v1107 = vadd.f32 %v978, %v979
    %v1108 = vadd.f32 %v1107, %v980
    %v1109 = vadd.f32 %v1108, %v981
    %v1110 = vadd.f32 %v1109, %v982
    %v1111 = vadd.f32 %v1110, %v983
    %v1112 = vadd.f32 %v1111, %v984
    %v1113 = vadd.f32 %v1112, %v985
    %v1114 = vadd.f32 %v1113, %v986
    %v1115 = vadd.f32 %v1114, %v987
    %v1116 = vadd.f32 %v1115, %v988
    %v1117 = vadd.f32 %v1116, %v989
    %v1118 = vadd.f32 %v1117, %v990
    %v1119 = vadd.f32 %v1118, %v991
    %v1120 = vadd.f32 %v1119, %v992
    %v1121 = vadd.f32 %v1120, %v993
    %v1122 = vadd.f32 %v1121, %v994
    %v1123 = vadd.f32 %v1122, %v995
    %v1124 = vadd.f32 %v1123, %v996
    %v1125 = vadd.f32 %v1124, %v997
    %v1126 = vadd.f32 %v1125, %v998
    %v1127 = vadd.f32 %v1126, %v999
    %v1128 = vadd.f32 %v1127, %v1000
    %v1129 = vadd.f32 %v1128, %v1001
    %v1130 = vadd.f32 %v1129, %v1002
    %v1131 = vadd.f32 %v1130, %v1003
    %v1132 = vadd.f32 %v1131, %v1004
    %v1133 = vadd.f32 %v1132, %v1005
    %v1134 = vadd.f32 %v1133, %v1006
    %v1135 = vadd.f32 %v1134, %v1007
    %v1136 = vadd.f32 %v1135, %v1008
    %v1137 = vadd.f32 %v1136, %v1009
    %v1138 = vadd.f32 %v1137, %v1010
    %v1139 = vadd.f32 %v1138, %v1011
    %v1140 = vadd.f32 %v1139, %v1012
    %v1141 = vadd.f32 %v1140, %v1013
    %v1142 = vadd.f32 %v1141, %v1014
    %v1143 = vadd.f32 %v1142, %v1015
    %v1144 = vadd.f32 %v1143, %v1016
    %v1145 = vadd.f32 %v1144, %v1017
    %v1146 = vadd.f32 %v1145, %v1018
    %v1147 = vadd.f32 %v1146, %v1019
    %v1148 = vadd.f32 %v1147, %v1020
    %v1149 = vadd.f32 %v1148, %v1021
    %v1150 = vadd.f32 %v1149, %v1022
    %v1151 = vadd.f32 %v1150, %v1023
    %v1152 = vadd.f32 %v1151, %v1024
    %v1153 = vadd.f32 %v1152, %v1025
    %v1154 = vadd.f32 %v1153, %v1026
    %v1155 = vadd.f32 %v1154, %v1027
    %v1156 = vadd.f32 %v1155, %v1028
    %v1157 = vadd.f32 %v1156, %v1029
    %v1158 = vadd.f32 %v1157, %v1030
    %v1159 = vadd.f32 %v1158, %v1031
    %v1160 = vadd.f32 %v1159, %v1032
    %v1161 = vadd.f32 %v1160, %v1033
    %v1162 = vadd.f32 %v1161, %v1034
    %v1163 = vadd.f32 %v1162, %v1035
    %v1164 = vadd.f32 %v1163, %v1036
    %v1165 = vadd.f32 %v1164, %v1037
    %v1166 = vadd.f32 %v1165, %v1038
    %v1167 = vadd.f32 %v1166, %v1039
    %v1168 = vadd.f32 %v1167, %v1040
    %v1169 = vadd.f32 %v1168, %v1041
    %v1170 = vadd.f32 %v1169, %v1042
    %v1171 = vadd.f32 %v1170, %v1043
    %v1172 = vadd.f32 %v1171, %v1044
    %v1173 = vadd.f32 %v1172, %v1045
    %v1174 = vadd.f32 %v1173, %v1046
    %v1175 = vadd.f32 %v1174, %v1047
    %v1176 = vadd.f32 %v1175, %v1048
    %v1177 = vadd.f32 %v1176, %v1049
    %v1178 = vadd.f32 %v1177, %v1050
    %v1179 = vadd.f32 %v1178, %v1051
    %v1180 = vadd.f32 %v1179, %v1052
    %v1181 = vadd.f32 %v1180, %v1053
    %v1182 = vadd.f32 %v1181, %v1054
    %v1183 = vadd.f32 %v1182, %v1055
    %v1184 = vadd.f32 %v1183, %v1056
    %v1185 = vadd.f32 %v1184, %v1057
    %v1186 = vadd.f32 %v1185, %v1058
    %v1187 = vadd.f32 %v1186, %v1059
    %v1188 = vadd.f32 %v1187, %v1060
    %v1189 = vadd.f32 %v1188, %v1061
    %v1190 = vadd.f32 %v1189, %v1062
    %v1191 = vadd.f32 %v1190, %v1063
    %v1192 = vadd.f32 %v1191, %v1064
    %v1193 = vadd.f32 %v1192, %v1065
    %v1194 = vadd.f32 %v1193, %v1066
    %v1195 = vadd.f32 %v1194, %v1067
    %v1196 = vadd.f32 %v1195, %v1068
    %v1197 = vadd.f32 %v1196, %v1069
    %v1198 = vadd.f32 %v1197, %v1070
    %v1199 = vadd.f32 %v1198, %v1071
    %v1200 = vadd.f32 %v1199, %v1072
    %v1201 = vadd.f32 %v1200, %v1073
    %v1202 = vadd.f32 %v1201, %v1074
    %v1203 = vadd.f32 %v1202, %v1075
    %v1204 = vadd.f32 %v1203, %v1076
    %v1205 = vadd.f32 %v1204, %v1077
    %v1206 = vadd.f32 %v1205, %v1078
    %v1207 = vadd.f32 %v1206, %v1079
    %v1208 = vadd.f32 %v1207, %v1080
    %v1209 = vadd.f32 %v1208, %v1081
    %v1210 = vadd.f32 %v1209, %v1082
    %v1211 = vadd.f32 %v1210, %v1083
    %v1212 = vadd.f32 %v1211, %v1084
    %v1213 = vadd.f32 %v1212, %v1085
    %v1214 = vadd.f32 %v1213, %v1086
    %v1215 = vadd.f32 %v1214, %v1087
    %v1216 = vadd.f32 %v1215, %v1088
    %v1217 = vadd.f32 %v1216, %v1089
    %v1218 = vadd.f32 %v1217, %v1090
    %v1219 = vadd.f32 %v1218, %v1091
    %v1220 = vadd.f32 %v1219, %v1092
    %v1221 = vadd.f32 %v1220, %v1093
    %v1222 = vadd.f32 %v1221, %v1094
    %v1223 = vadd.f32 %v1222, %v1095
    %v1224 = vadd.f32 %v1223, %v1096
    %v1225 = vadd.f32 %v1224, %v1097
    %v1226 = vadd.f32 %v1225, %v1098
    %v1227 = vadd.f32 %v1226, %v1099
    %v1228 = vadd.f32 %v1227, %v1100
    %v1229 = vadd.f32 %v1228, %v1101
    %v1230 = vadd.f32 %v1229, %v1102
    %v1231 = vadd.f32 %v1230, %v1103
    %v1232 = vadd.f32 %v1231, %v1104
    %v1233 = vadd.f32 %v1232, %v1105
    %v1234 = vadd.f32 %v1106, %v1233
    %1235 = vst [vmem:[#allocation3] sm:$0xff] %v1234
    %v1236 = vld [vmem:[#allocation10] sm:$0xff]
    %v1237 = vld [vmem:[#allocation10 + $0x8] sm:$0xff]
    %v1238 = vld [vmem:[#allocation10 + $0x10] sm:$0xff]
    %v1239 = vld [vmem:[#allocation10 + $0x18] sm:$0xff]
    %v1240 = vld [vmem:[#allocation10 + $0x20] sm:$0xff]
    %v1241 = vld [vmem:[#allocation10 + $0x28] sm:$0xff]
    %v1242 = vld [vmem:[#allocation10 + $0x30] sm:$0xff]
    %v1243 = vld [vmem:[#allocation10 + $0x38] sm:$0xff]
    %v1244 = vld [vmem:[#allocation10 + $0x40] sm:$0xff]
    %v1245 = vld [vmem:[#allocation10 + $0x48] sm:$0xff]
    %v1246 = vld [vmem:[#allocation10 + $0x50] sm:$0xff]
    %v1247 = vld [vmem:[#allocation10 + $0x58] sm:$0xff]
    %v1248 = vld [vmem:[#allocation10 + $0x60] sm:$0xff]
    %v1249 = vld [vmem:[#allocation10 + $0x68] sm:$0xff]
    %v1250 = vld [vmem:[#allocation10 + $0x70] sm:$0xff]
    %v1251 = vld [vmem:[#allocation10 + $0x78] sm:$0xff]
    %v1252 = vld [vmem:[#allocation10 + $0x80] sm:$0xff]
    %v1253 = vld [vmem:[#allocation10 + $0x88] sm:$0xff]
    %v1254 = vld [vmem:[#allocation10 + $0x90] sm:$0xff]
    %v1255 = vld [vmem:[#allocation10 + $0x98] sm:$0xff]
    %v1256 = vld [vmem:[#allocation10 + $0xa0] sm:$0xff]
    %v1257 = vld [vmem:[#allocation10 + $0xa8] sm:$0xff]
    %v1258 = vld [vmem:[#allocation10 + $0xb0] sm:$0xff]
    %v1259 = vld [vmem:[#allocation10 + $0xb8] sm:$0xff]
    %v1260 = vld [vmem:[#allocation10 + $0xc0] sm:$0xff]
    %v1261 = vld [vmem:[#allocation10 + $0xc8] sm:$0xff]
    %v1262 = vld [vmem:[#allocation10 + $0xd0] sm:$0xff]
    %v1263 = vld [vmem:[#allocation10 + $0xd8] sm:$0xff]
    %v1264 = vld [vmem:[#allocation10 + $0xe0] sm:$0xff]
    %v1265 = vld [vmem:[#allocation10 + $0xe8] sm:$0xff]
    %v1266 = vld [vmem:[#allocation10 + $0xf0] sm:$0xff]
    %v1267 = vld [vmem:[#allocation10 + $0xf8] sm:$0xff]
    %v1268 = vld [vmem:[#allocation10 + $0x100] sm:$0xff]
    %v1269 = vld [vmem:[#allocation10 + $0x108] sm:$0xff]
    %v1270 = vld [vmem:[#allocation10 + $0x110] sm:$0xff]
    %v1271 = vld [vmem:[#allocation10 + $0x118] sm:$0xff]
    %v1272 = vld [vmem:[#allocation10 + $0x120] sm:$0xff]
    %v1273 = vld [vmem:[#allocation10 + $0x128] sm:$0xff]
    %v1274 = vld [vmem:[#allocation10 + $0x130] sm:$0xff]
    %v1275 = vld [vmem:[#allocation10 + $0x138] sm:$0xff]
    %v1276 = vld [vmem:[#allocation10 + $0x140] sm:$0xff]
    %v1277 = vld [vmem:[#allocation10 + $0x148] sm:$0xff]
    %v1278 = vld [vmem:[#allocation10 + $0x150] sm:$0xff]
    %v1279 = vld [vmem:[#allocation10 + $0x158] sm:$0xff]
    %v1280 = vld [vmem:[#allocation10 + $0x160] sm:$0xff]
    %v1281 = vld [vmem:[#allocation10 + $0x168] sm:$0xff]
    %v1282 = vld [vmem:[#allocation10 + $0x170] sm:$0xff]
    %v1283 = vld [vmem:[#allocation10 + $0x178] sm:$0xff]
    %v1284 = vld [vmem:[#allocation10 + $0x180] sm:$0xff]
    %v1285 = vld [vmem:[#allocation10 + $0x188] sm:$0xff]
    %v1286 = vld [vmem:[#allocation10 + $0x190] sm:$0xff]
    %v1287 = vld [vmem:[#allocation10 + $0x198] sm:$0xff]
    %v1288 = vld [vmem:[#allocation10 + $0x1a0] sm:$0xff]
    %v1289 = vld [vmem:[#allocation10 + $0x1a8] sm:$0xff]
    %v1290 = vld [vmem:[#allocation10 + $0x1b0] sm:$0xff]
    %v1291 = vld [vmem:[#allocation10 + $0x1b8] sm:$0xff]
    %v1292 = vld [vmem:[#allocation10 + $0x1c0] sm:$0xff]
    %v1293 = vld [vmem:[#allocation10 + $0x1c8] sm:$0xff]
    %v1294 = vld [vmem:[#allocation10 + $0x1d0] sm:$0xff]
    %v1295 = vld [vmem:[#allocation10 + $0x1d8] sm:$0xff]
    %v1296 = vld [vmem:[#allocation10 + $0x1e0] sm:$0xff]
    %v1297 = vld [vmem:[#allocation10 + $0x1e8] sm:$0xff]
    %v1298 = vld [vmem:[#allocation10 + $0x1f0] sm:$0xff]
    %v1299 = vld [vmem:[#allocation10 + $0x1f8] sm:$0xff]
    %v1300 = vld [vmem:[#allocation10 + $0x200] sm:$0xff]
    %v1301 = vld [vmem:[#allocation10 + $0x208] sm:$0xff]
    %v1302 = vld [vmem:[#allocation10 + $0x210] sm:$0xff]
    %v1303 = vld [vmem:[#allocation10 + $0x218] sm:$0xff]
    %v1304 = vld [vmem:[#allocation10 + $0x220] sm:$0xff]
    %v1305 = vld [vmem:[#allocation10 + $0x228] sm:$0xff]
    %v1306 = vld [vmem:[#allocation10 + $0x230] sm:$0xff]
    %v1307 = vld [vmem:[#allocation10 + $0x238] sm:$0xff]
    %v1308 = vld [vmem:[#allocation10 + $0x240] sm:$0xff]
    %v1309 = vld [vmem:[#allocation10 + $0x248] sm:$0xff]
    %v1310 = vld [vmem:[#allocation10 + $0x250] sm:$0xff]
    %v1311 = vld [vmem:[#allocation10 + $0x258] sm:$0xff]
    %v1312 = vld [vmem:[#allocation10 + $0x260] sm:$0xff]
    %v1313 = vld [vmem:[#allocation10 + $0x268] sm:$0xff]
    %v1314 = vld [vmem:[#allocation10 + $0x270] sm:$0xff]
    %v1315 = vld [vmem:[#allocation10 + $0x278] sm:$0xff]
    %v1316 = vld [vmem:[#allocation10 + $0x280] sm:$0xff]
    %v1317 = vld [vmem:[#allocation10 + $0x288] sm:$0xff]
    %v1318 = vld [vmem:[#allocation10 + $0x290] sm:$0xff]
    %v1319 = vld [vmem:[#allocation10 + $0x298] sm:$0xff]
    %v1320 = vld [vmem:[#allocation10 + $0x2a0] sm:$0xff]
    %v1321 = vld [vmem:[#allocation10 + $0x2a8] sm:$0xff]
    %v1322 = vld [vmem:[#allocation10 + $0x2b0] sm:$0xff]
    %v1323 = vld [vmem:[#allocation10 + $0x2b8] sm:$0xff]
    %v1324 = vld [vmem:[#allocation10 + $0x2c0] sm:$0xff]
    %v1325 = vld [vmem:[#allocation10 + $0x2c8] sm:$0xff]
    %v1326 = vld [vmem:[#allocation10 + $0x2d0] sm:$0xff]
    %v1327 = vld [vmem:[#allocation10 + $0x2d8] sm:$0xff]
    %v1328 = vld [vmem:[#allocation10 + $0x2e0] sm:$0xff]
    %v1329 = vld [vmem:[#allocation10 + $0x2e8] sm:$0xff]
    %v1330 = vld [vmem:[#allocation10 + $0x2f0] sm:$0xff]
    %v1331 = vld [vmem:[#allocation10 + $0x2f8] sm:$0xff]
    %v1332 = vld [vmem:[#allocation10 + $0x300] sm:$0xff]
    %v1333 = vld [vmem:[#allocation10 + $0x308] sm:$0xff]
    %v1334 = vld [vmem:[#allocation10 + $0x310] sm:$0xff]
    %v1335 = vld [vmem:[#allocation10 + $0x318] sm:$0xff]
    %v1336 = vld [vmem:[#allocation10 + $0x320] sm:$0xff]
    %v1337 = vld [vmem:[#allocation10 + $0x328] sm:$0xff]
    %v1338 = vld [vmem:[#allocation10 + $0x330] sm:$0xff]
    %v1339 = vld [vmem:[#allocation10 + $0x338] sm:$0xff]
    %v1340 = vld [vmem:[#allocation10 + $0x340] sm:$0xff]
    %v1341 = vld [vmem:[#allocation10 + $0x348] sm:$0xff]
    %v1342 = vld [vmem:[#allocation10 + $0x350] sm:$0xff]
    %v1343 = vld [vmem:[#allocation10 + $0x358] sm:$0xff]
    %v1344 = vld [vmem:[#allocation10 + $0x360] sm:$0xff]
    %v1345 = vld [vmem:[#allocation10 + $0x368] sm:$0xff]
    %v1346 = vld [vmem:[#allocation10 + $0x370] sm:$0xff]
    %v1347 = vld [vmem:[#allocation10 + $0x378] sm:$0xff]
    %v1348 = vld [vmem:[#allocation10 + $0x380] sm:$0xff]
    %v1349 = vld [vmem:[#allocation10 + $0x388] sm:$0xff]
    %v1350 = vld [vmem:[#allocation10 + $0x390] sm:$0xff]
    %v1351 = vld [vmem:[#allocation10 + $0x398] sm:$0xff]
    %v1352 = vld [vmem:[#allocation10 + $0x3a0] sm:$0xff]
    %v1353 = vld [vmem:[#allocation10 + $0x3a8] sm:$0xff]
    %v1354 = vld [vmem:[#allocation10 + $0x3b0] sm:$0xff]
    %v1355 = vld [vmem:[#allocation10 + $0x3b8] sm:$0xff]
    %v1356 = vld [vmem:[#allocation10 + $0x3c0] sm:$0xff]
    %v1357 = vld [vmem:[#allocation10 + $0x3c8] sm:$0xff]
    %v1358 = vld [vmem:[#allocation10 + $0x3d0] sm:$0xff]
    %v1359 = vld [vmem:[#allocation10 + $0x3d8] sm:$0xff]
    %v1360 = vld [vmem:[#allocation10 + $0x3e0] sm:$0xff]
    %v1361 = vld [vmem:[#allocation10 + $0x3e8] sm:$0xff]
    %v1362 = vld [vmem:[#allocation10 + $0x3f0] sm:$0xff]
    %v1363 = vld [vmem:[#allocation10 + $0x3f8] sm:$0xff]
    %v1364 = vsub.f32 %v1236, %v80
    %v1365 = vsub.f32 %v1237, %v81
    %v1366 = vsub.f32 %v1238, %v82
    %v1367 = vsub.f32 %v1239, %v83
    %v1368 = vsub.f32 %v1240, %v84
    %v1369 = vsub.f32 %v1241, %v85
    %v1370 = vsub.f32 %v1242, %v86
    %v1371 = vsub.f32 %v1243, %v87
    %v1372 = vsub.f32 %v1244, %v88
    %v1373 = vsub.f32 %v1245, %v89
    %v1374 = vsub.f32 %v1246, %v90
    %v1375 = vsub.f32 %v1247, %v91
    %v1376 = vsub.f32 %v1248, %v92
    %v1377 = vsub.f32 %v1249, %v93
    %v1378 = vsub.f32 %v1250, %v94
    %v1379 = vsub.f32 %v1251, %v95
    %v1380 = vsub.f32 %v1252, %v96
    %v1381 = vsub.f32 %v1253, %v97
    %v1382 = vsub.f32 %v1254, %v98
    %v1383 = vsub.f32 %v1255, %v99
    %v1384 = vsub.f32 %v1256, %v100
    %v1385 = vsub.f32 %v1257, %v101
    %v1386 = vsub.f32 %v1258, %v102
    %v1387 = vsub.f32 %v1259, %v103
    %v1388 = vsub.f32 %v1260, %v104
    %v1389 = vsub.f32 %v1261, %v105
    %v1390 = vsub.f32 %v1262, %v106
    %v1391 = vsub.f32 %v1263, %v107
    %v1392 = vsub.f32 %v1264, %v108
    %v1393 = vsub.f32 %v1265, %v109
    %v1394 = vsub.f32 %v1266, %v110
    %v1395 = vsub.f32 %v1267, %v111
    %v1396 = vsub.f32 %v1268, %v112
    %v1397 = vsub.f32 %v1269, %v113
    %v1398 = vsub.f32 %v1270, %v114
    %v1399 = vsub.f32 %v1271, %v115
    %v1400 = vsub.f32 %v1272, %v116
    %v1401 = vsub.f32 %v1273, %v117
    %v1402 = vsub.f32 %v1274, %v118
    %v1403 = vsub.f32 %v1275, %v119
    %v1404 = vsub.f32 %v1276, %v120
    %v1405 = vsub.f32 %v1277, %v121
    %v1406 = vsub.f32 %v1278, %v122
    %v1407 = vsub.f32 %v1279, %v123
    %v1408 = vsub.f32 %v1280, %v124
    %v1409 = vsub.f32 %v1281, %v125
    %v1410 = vsub.f32 %v1282, %v126
    %v1411 = vsub.f32 %v1283, %v127
    %v1412 = vsub.f32 %v1284, %v128
    %v1413 = vsub.f32 %v1285, %v129
    %v1414 = vsub.f32 %v1286, %v130
    %v1415 = vsub.f32 %v1287, %v131
    %v1416 = vsub.f32 %v1288, %v132
    %v1417 = vsub.f32 %v1289, %v133
    %v1418 = vsub.f32 %v1290, %v134
    %v1419 = vsub.f32 %v1291, %v135
    %v1420 = vsub.f32 %v1292, %v136
    %v1421 = vsub.f32 %v1293, %v137
    %v1422 = vsub.f32 %v1294, %v138
    %v1423 = vsub.f32 %v1295, %v139
    %v1424 = vsub.f32 %v1296, %v140
    %v1425 = vsub.f32 %v1297, %v141
    %v1426 = vsub.f32 %v1298, %v142
    %v1427 = vsub.f32 %v1299, %v143
    %v1428 = vsub.f32 %v1300, %v144
    %v1429 = vsub.f32 %v1301, %v145
    %v1430 = vsub.f32 %v1302, %v146
    %v1431 = vsub.f32 %v1303, %v147
    %v1432 = vsub.f32 %v1304, %v148
    %v1433 = vsub.f32 %v1305, %v149
    %v1434 = vsub.f32 %v1306, %v150
    %v1435 = vsub.f32 %v1307, %v151
    %v1436 = vsub.f32 %v1308, %v152
    %v1437 = vsub.f32 %v1309, %v153
    %v1438 = vsub.f32 %v1310, %v154
    %v1439 = vsub.f32 %v1311, %v155
    %v1440 = vsub.f32 %v1312, %v156
    %v1441 = vsub.f32 %v1313, %v157
    %v1442 = vsub.f32 %v1314, %v158
    %v1443 = vsub.f32 %v1315, %v159
    %v1444 = vsub.f32 %v1316, %v160
    %v1445 = vsub.f32 %v1317, %v161
    %v1446 = vsub.f32 %v1318, %v162
    %v1447 = vsub.f32 %v1319, %v163
    %v1448 = vsub.f32 %v1320, %v164
    %v1449 = vsub.f32 %v1321, %v165
    %v1450 = vsub.f32 %v1322, %v166
    %v1451 = vsub.f32 %v1323, %v167
    %v1452 = vsub.f32 %v1324, %v168
    %v1453 = vsub.f32 %v1325, %v169
    %v1454 = vsub.f32 %v1326, %v170
    %v1455 = vsub.f32 %v1327, %v171
    %v1456 = vsub.f32 %v1328, %v172
    %v1457 = vsub.f32 %v1329, %v173
    %v1458 = vsub.f32 %v1330, %v174
    %v1459 = vsub.f32 %v1331, %v175
    %v1460 = vsub.f32 %v1332, %v176
    %v1461 = vsub.f32 %v1333, %v177
    %v1462 = vsub.f32 %v1334, %v178
    %v1463 = vsub.f32 %v1335, %v179
    %v1464 = vsub.f32 %v1336, %v180
    %v1465 = vsub.f32 %v1337, %v181
    %v1466 = vsub.f32 %v1338, %v182
    %v1467 = vsub.f32 %v1339, %v183
    %v1468 = vsub.f32 %v1340, %v184
    %v1469 = vsub.f32 %v1341, %v185
    %v1470 = vsub.f32 %v1342, %v186
    %v1471 = vsub.f32 %v1343, %v187
    %v1472 = vsub.f32 %v1344, %v188
    %v1473 = vsub.f32 %v1345, %v189
    %v1474 = vsub.f32 %v1346, %v190
    %v1475 = vsub.f32 %v1347, %v191
    %v1476 = vsub.f32 %v1348, %v192
    %v1477 = vsub.f32 %v1349, %v193
    %v1478 = vsub.f32 %v1350, %v194
    %v1479 = vsub.f32 %v1351, %v195
    %v1480 = vsub.f32 %v1352, %v196
    %v1481 = vsub.f32 %v1353, %v197
    %v1482 = vsub.f32 %v1354, %v198
    %v1483 = vsub.f32 %v1355, %v199
    %v1484 = vsub.f32 %v1356, %v200
    %v1485 = vsub.f32 %v1357, %v201
    %v1486 = vsub.f32 %v1358, %v202
    %v1487 = vsub.f32 %v1359, %v203
    %v1488 = vsub.f32 %v1360, %v204
    %v1489 = vsub.f32 %v1361, %v205
    %v1490 = vsub.f32 %v1362, %v206
    %v1491 = vsub.f32 %v1363, %v207
    %v1492 = vmul.f32 %v1364, %v1364
    %v1493 = vmul.f32 %v1365, %v1365
    %v1494 = vmul.f32 %v1366, %v1366
    %v1495 = vmul.f32 %v1367, %v1367
    %v1496 = vmul.f32 %v1368, %v1368
    %v1497 = vmul.f32 %v1369, %v1369
    %v1498 = vmul.f32 %v1370, %v1370
    %v1499 = vmul.f32 %v1371, %v1371
    %v1500 = vmul.f32 %v1372, %v1372
    %v1501 = vmul.f32 %v1373, %v1373
    %v1502 = vmul.f32 %v1374, %v1374
    %v1503 = vmul.f32 %v1375, %v1375
    %v1504 = vmul.f32 %v1376, %v1376
    %v1505 = vmul.f32 %v1377, %v1377
    %v1506 = vmul.f32 %v1378, %v1378
    %v1507 = vmul.f32 %v1379, %v1379
    %v1508 = vmul.f32 %v1380, %v1380
    %v1509 = vmul.f32 %v1381, %v1381
    %v1510 = vmul.f32 %v1382, %v1382
    %v1511 = vmul.f32 %v1383, %v1383
    %v1512 = vmul.f32 %v1384, %v1384
    %v1513 = vmul.f32 %v1385, %v1385
    %v1514 = vmul.f32 %v1386, %v1386
    %v1515 = vmul.f32 %v1387, %v1387
    %v1516 = vmul.f32 %v1388, %v1388
    %v1517 = vmul.f32 %v1389, %v1389
    %v1518 = vmul.f32 %v1390, %v1390
    %v1519 = vmul.f32 %v1391, %v1391
    %v1520 = vmul.f32 %v1392, %v1392
    %v1521 = vmul.f32 %v1393, %v1393
    %v1522 = vmul.f32 %v1394, %v1394
    %v1523 = vmul.f32 %v1395, %v1395
    %v1524 = vmul.f32 %v1396, %v1396
    %v1525 = vmul.f32 %v1397, %v1397
    %v1526 = vmul.f32 %v1398, %v1398
    %v1527 = vmul.f32 %v1399, %v1399
    %v1528 = vmul.f32 %v1400, %v1400
    %v1529 = vmul.f32 %v1401, %v1401
    %v1530 = vmul.f32 %v1402, %v1402
    %v1531 = vmul.f32 %v1403, %v1403
    %v1532 = vmul.f32 %v1404, %v1404
    %v1533 = vmul.f32 %v1405, %v1405
    %v1534 = vmul.f32 %v1406, %v1406
    %v1535 = vmul.f32 %v1407, %v1407
    %v1536 = vmul.f32 %v1408, %v1408
    %v1537 = vmul.f32 %v1409, %v1409
    %v1538 = vmul.f32 %v1410, %v1410
    %v1539 = vmul.f32 %v1411, %v1411
    %v1540 = vmul.f32 %v1412, %v1412
    %v1541 = vmul.f32 %v1413, %v1413
    %v1542 = vmul.f32 %v1414, %v1414
    %v1543 = vmul.f32 %v1415, %v1415
    %v1544 = vmul.f32 %v1416, %v1416
    %v1545 = vmul.f32 %v1417, %v1417
    %v1546 = vmul.f32 %v1418, %v1418
    %v1547 = vmul.f32 %v1419, %v1419
    %v1548 = vmul.f32 %v1420, %v1420
    %v1549 = vmul.f32 %v1421, %v1421
    %v1550 = vmul.f32 %v1422, %v1422
    %v1551 = vmul.f32 %v1423, %v1423
    %v1552 = vmul.f32 %v1424, %v1424
    %v1553 = vmul.f32 %v1425, %v1425
    %v1554 = vmul.f32 %v1426, %v1426
    %v1555 = vmul.f32 %v1427, %v1427
    %v1556 = vmul.f32 %v1428, %v1428
    %v1557 = vmul.f32 %v1429, %v1429
    %v1558 = vmul.f32 %v1430, %v1430
    %v1559 = vmul.f32 %v1431, %v1431
    %v1560 = vmul.f32 %v1432, %v1432
    %v1561 = vmul.f32 %v1433, %v1433
    %v1562 = vmul.f32 %v1434, %v1434
    %v1563 = vmul.f32 %v1435, %v1435
    %v1564 = vmul.f32 %v1436, %v1436
    %v1565 = vmul.f32 %v1437, %v1437
    %v1566 = vmul.f32 %v1438, %v1438
    %v1567 = vmul.f32 %v1439, %v1439
    %v1568 = vmul.f32 %v1440, %v1440
    %v1569 = vmul.f32 %v1441, %v1441
    %v1570 = vmul.f32 %v1442, %v1442
    %v1571 = vmul.f32 %v1443, %v1443
    %v1572 = vmul.f32 %v1444, %v1444
    %v1573 = vmul.f32 %v1445, %v1445
    %v1574 = vmul.f32 %v1446, %v1446
    %v1575 = vmul.f32 %v1447, %v1447
    %v1576 = vmul.f32 %v1448, %v1448
    %v1577 = vmul.f32 %v1449, %v1449
    %v1578 = vmul.f32 %v1450, %v1450
    %v1579 = vmul.f32 %v1451, %v1451
    %v1580 = vmul.f32 %v1452, %v1452
    %v1581 = vmul.f32 %v1453, %v1453
    %v1582 = vmul.f32 %v1454, %v1454
    %v1583 = vmul.f32 %v1455, %v1455
    %v1584 = vmul.f32 %v1456, %v1456
    %v1585 = vmul.f32 %v1457, %v1457
    %v1586 = vmul.f32 %v1458, %v1458
    %v1587 = vmul.f32 %v1459, %v1459
    %v1588 = vmul.f32 %v1460, %v1460
    %v1589 = vmul.f32 %v1461, %v1461
    %v1590 = vmul.f32 %v1462, %v1462
    %v1591 = vmul.f32 %v1463, %v1463
    %v1592 = vmul.f32 %v1464, %v1464
    %v1593 = vmul.f32 %v1465, %v1465
    %v1594 = vmul.f32 %v1466, %v1466
    %v1595 = vmul.f32 %v1467, %v1467
    %v1596 = vmul.f32 %v1468, %v1468
    %v1597 = vmul.f32 %v1469, %v1469
    %v1598 = vmul.f32 %v1470, %v1470
    %v1599 = vmul.f32 %v1471, %v1471
    %v1600 = vmul.f32 %v1472, %v1472
    %v1601 = vmul.f32 %v1473, %v1473
    %v1602 = vmul.f32 %v1474, %v1474
    %v1603 = vmul.f32 %v1475, %v1475
    %v1604 = vmul.f32 %v1476, %v1476
    %v1605 = vmul.f32 %v1477, %v1477
    %v1606 = vmul.f32 %v1478, %v1478
    %v1607 = vmul.f32 %v1479, %v1479
    %v1608 = vmul.f32 %v1480, %v1480
    %v1609 = vmul.f32 %v1481, %v1481
    %v1610 = vmul.f32 %v1482, %v1482
    %v1611 = vmul.f32 %v1483, %v1483
    %v1612 = vmul.f32 %v1484, %v1484
    %v1613 = vmul.f32 %v1485, %v1485
    %v1614 = vmul.f32 %v1486, %v1486
    %v1615 = vmul.f32 %v1487, %v1487
    %v1616 = vmul.f32 %v1488, %v1488
    %v1617 = vmul.f32 %v1489, %v1489
    %v1618 = vmul.f32 %v1490, %v1490
    %v1619 = vmul.f32 %v1491, %v1491
    %v1620 = vld [vmem:[#allocation4] sm:$0xff]
    %v1621 = vadd.f32 %v1492, %v1493
    %v1622 = vadd.f32 %v1621, %v1494
    %v1623 = vadd.f32 %v1622, %v1495
    %v1624 = vadd.f32 %v1623, %v1496
    %v1625 = vadd.f32 %v1624, %v1497
    %v1626 = vadd.f32 %v1625, %v1498
    %v1627 = vadd.f32 %v1626, %v1499
    %v1628 = vadd.f32 %v1627, %v1500
    %v1629 = vadd.f32 %v1628, %v1501
    %v1630 = vadd.f32 %v1629, %v1502
    %v1631 = vadd.f32 %v1630, %v1503
    %v1632 = vadd.f32 %v1631, %v1504
    %v1633 = vadd.f32 %v1632, %v1505
    %v1634 = vadd.f32 %v1633, %v1506
    %v1635 = vadd.f32 %v1634, %v1507
    %v1636 = vadd.f32 %v1635, %v1508
    %v1637 = vadd.f32 %v1636, %v1509
    %v1638 = vadd.f32 %v1637, %v1510
    %v1639 = vadd.f32 %v1638, %v1511
    %v1640 = vadd.f32 %v1639, %v1512
    %v1641 = vadd.f32 %v1640, %v1513
    %v1642 = vadd.f32 %v1641, %v1514
    %v1643 = vadd.f32 %v1642, %v1515
    %v1644 = vadd.f32 %v1643, %v1516
    %v1645 = vadd.f32 %v1644, %v1517
    %v1646 = vadd.f32 %v1645, %v1518
    %v1647 = vadd.f32 %v1646, %v1519
    %v1648 = vadd.f32 %v1647, %v1520
    %v1649 = vadd.f32 %v1648, %v1521
    %v1650 = vadd.f32 %v1649, %v1522
    %v1651 = vadd.f32 %v1650, %v1523
    %v1652 = vadd.f32 %v1651, %v1524
    %v1653 = vadd.f32 %v1652, %v1525
    %v1654 = vadd.f32 %v1653, %v1526
    %v1655 = vadd.f32 %v1654, %v1527
    %v1656 = vadd.f32 %v1655, %v1528
    %v1657 = vadd.f32 %v1656, %v1529
    %v1658 = vadd.f32 %v1657, %v1530
    %v1659 = vadd.f32 %v1658, %v1531
    %v1660 = vadd.f32 %v1659, %v1532
    %v1661 = vadd.f32 %v1660, %v1533
    %v1662 = vadd.f32 %v1661, %v1534
    %v1663 = vadd.f32 %v1662, %v1535
    %v1664 = vadd.f32 %v1663, %v1536
    %v1665 = vadd.f32 %v1664, %v1537
    %v1666 = vadd.f32 %v1665, %v1538
    %v1667 = vadd.f32 %v1666, %v1539
    %v1668 = vadd.f32 %v1667, %v1540
    %v1669 = vadd.f32 %v1668, %v1541
    %v1670 = vadd.f32 %v1669, %v1542
    %v1671 = vadd.f32 %v1670, %v1543
    %v1672 = vadd.f32 %v1671, %v1544
    %v1673 = vadd.f32 %v1672, %v1545
    %v1674 = vadd.f32 %v1673, %v1546
    %v1675 = vadd.f32 %v1674, %v1547
    %v1676 = vadd.f32 %v1675, %v1548
    %v1677 = vadd.f32 %v1676, %v1549
    %v1678 = vadd.f32 %v1677, %v1550
    %v1679 = vadd.f32 %v1678, %v1551
    %v1680 = vadd.f32 %v1679, %v1552
    %v1681 = vadd.f32 %v1680, %v1553
    %v1682 = vadd.f32 %v1681, %v1554
    %v1683 = vadd.f32 %v1682, %v1555
    %v1684 = vadd.f32 %v1683, %v1556
    %v1685 = vadd.f32 %v1684, %v1557
    %v1686 = vadd.f32 %v1685, %v1558
    %v1687 = vadd.f32 %v1686, %v1559
    %v1688 = vadd.f32 %v1687, %v1560
    %v1689 = vadd.f32 %v1688, %v1561
    %v1690 = vadd.f32 %v1689, %v1562
    %v1691 = vadd.f32 %v1690, %v1563
    %v1692 = vadd.f32 %v1691, %v1564
    %v1693 = vadd.f32 %v1692, %v1565
    %v1694 = vadd.f32 %v1693, %v1566
    %v1695 = vadd.f32 %v1694, %v1567
    %v1696 = vadd.f32 %v1695, %v1568
    %v1697 = vadd.f32 %v1696, %v1569
    %v1698 = vadd.f32 %v1697, %v1570
    %v1699 = vadd.f32 %v1698, %v1571
    %v1700 = vadd.f32 %v1699, %v1572
    %v1701 = vadd.f32 %v1700, %v1573
    %v1702 = vadd.f32 %v1701, %v1574
    %v1703 = vadd.f32 %v1702, %v1575
    %v1704 = vadd.f32 %v1703, %v1576
    %v1705 = vadd.f32 %v1704, %v1577
    %v1706 = vadd.f32 %v1705, %v1578
    %v1707 = vadd.f32 %v1706, %v1579
    %v1708 = vadd.f32 %v1707, %v1580
    %v1709 = vadd.f32 %v1708, %v1581
    %v1710 = vadd.f32 %v1709, %v1582
    %v1711 = vadd.f32 %v1710, %v1583
    %v1712 = vadd.f32 %v1711, %v1584
    %v1713 = vadd.f32 %v1712, %v1585
    %v1714 = vadd.f32 %v1713, %v1586
    %v1715 = vadd.f32 %v1714, %v1587
    %v1716 = vadd.f32 %v1715, %v1588
    %v1717 = vadd.f32 %v1716, %v1589
    %v1718 = vadd.f32 %v1717, %v1590
    %v1719 = vadd.f32 %v1718, %v1591
    %v1720 = vadd.f32 %v1719, %v1592
    %v1721 = vadd.f32 %v1720, %v1593
    %v1722 = vadd.f32 %v1721, %v1594
    %v1723 = vadd.f32 %v1722, %v1595
    %v1724 = vadd.f32 %v1723, %v1596
    %v1725 = vadd.f32 %v1724, %v1597
    %v1726 = vadd.f32 %v1725, %v1598
    %v1727 = vadd.f32 %v1726, %v1599
    %v1728 = vadd.f32 %v1727, %v1600
    %v1729 = vadd.f32 %v1728, %v1601
    %v1730 = vadd.f32 %v1729, %v1602
    %v1731 = vadd.f32 %v1730, %v1603
    %v1732 = vadd.f32 %v1731, %v1604
    %v1733 = vadd.f32 %v1732, %v1605
    %v1734 = vadd.f32 %v1733, %v1606
    %v1735 = vadd.f32 %v1734, %v1607
    %v1736 = vadd.f32 %v1735, %v1608
    %v1737 = vadd.f32 %v1736, %v1609
    %v1738 = vadd.f32 %v1737, %v1610
    %v1739 = vadd.f32 %v1738, %v1611
    %v1740 = vadd.f32 %v1739, %v1612
    %v1741 = vadd.f32 %v1740, %v1613
    %v1742 = vadd.f32 %v1741, %v1614
    %v1743 = vadd.f32 %v1742, %v1615
    %v1744 = vadd.f32 %v1743, %v1616
    %v1745 = vadd.f32 %v1744, %v1617
    %v1746 = vadd.f32 %v1745, %v1618
    %v1747 = vadd.f32 %v1746, %v1619
    %v1748 = vadd.f32 %v1620, %v1747
    %1749 = vst [vmem:[#allocation4] sm:$0xff] %v1748
    // Predicated region
    $region38: #{tpu_custom_call.1} parent=1 // pred_check
      %p1750 = pneg %p73
    $region39: #{tpu_custom_call.1} parent=1 // pred_check_branch
      %1752 = sbr.rel (%p1750) target = $region41
    $region40: #{tpu_custom_call.1} parent=1 // pred_region
      %v1753 = vld [vmem:[#allocation2] sm:$0xff]
      %v1754 = vmul.f32 %v1753, 0.14285715
      %v1755 = vld [vmem:[#allocation3] sm:$0xff]
      %v1756 = vmul.f32 %v1755, 0.2857143
      %v1757 = vadd.f32 %v1754, %v1756
      %v1758 = vld [vmem:[#allocation4] sm:$0xff]
      %v1759 = vmul.f32 %v1758, 0.5714286
      %v1760 = vadd.f32 %v1757, %v1759
      %1761 = vst [vmem:[#allocation13] sm:$0xff] %v1760
    $region41: #{tpu_custom_call.1} parent=1 // pred_fallthru
      _
    // Predicated region
    $region42: #{tpu_custom_call.1} parent=1 // pred_check
      _
    $region43: #{tpu_custom_call.1} parent=1 // pred_check_branch
      %1763 = sbr.rel (0) target = $region45
    $region44: #{tpu_custom_call.1} parent=1 // pred_region
      %s1765 = ssub.s32 128, 128
      %1766 = vsyncadd [#allocation7], %s1765
      %s1768 = sshll.u32 [#allocation13], 4
      %s1769 = int_to_ptr.vmem [resolvable:$true] %s1768
      %1771 = dma.vmem_to_hbm [thread:$0]  %s1769, 128, %s4, [#allocation7]
    $region45: #{tpu_custom_call.1} parent=1 // pred_fallthru
      _
    // Predicated region
    $region46: #{tpu_custom_call.1} parent=1 // pred_check
      _
    $region47: #{tpu_custom_call.1} parent=1 // pred_check_branch
      %1773 = sbr.rel (0) target = $region49
    $region48: #{tpu_custom_call.1} parent=1 // pred_region
      %1774 = dma.done [#allocation7], 128
    $region49: #{tpu_custom_call.1} parent=1 // pred_fallthru
      _
    %1775 = vsyncpa [#allocation6], 1
    %1776 = vsyncpa [#allocation9], 1
    %1777 = vsyncpa [#allocation12], 1
    %1778 = vsyncpa [#allocation7], 1

</llo_original>
